<compile_context>
chip_gen: v5e
topology: v5e:2x2
jax: 0.10.0
libtpu: 0.0.40
codegen_flags: <defaults>
</compile_context>

<pallas_src>
import functools
from typing import NamedTuple

import jax
import jax.numpy as jnp
from jax import lax
from jax.experimental import pallas as pl
from jax.experimental.pallas import tpu as pltpu


def _round_up(x, m):
    return ((x + m - 1) // m) * m


class DlowCfg(NamedTuple):
    C: int            # cond_channels
    H: int            # nh_rnn
    nh1: int          # nh_mlp[0]
    nh2: int          # nh_mlp[1]
    n_sample: int
    x_channels: int
    nk_nz: int        # n_sample * x_channels
    CP: int           # cond channels padded to 8 rows
    GP: int           # per-gate lane block (H padded to 128)
    NKP: int          # per-head lane block (nk_nz padded to 128)
    NH1L: int         # nh1 padded to 128 lanes
    NH2L: int         # nh2 padded to 128 lanes
    WMW: int          # packed MLP buffer width
    MLP_ROWS: int     # packed MLP buffer rows
    # row offsets inside the packed buffers (all multiples of 8)
    R_WHH: int
    R_BIH: int
    R_BHH: int
    R_B1: int
    R_W2: int
    R_B2: int
    R_WAB: int
    R_BAB: int


# -----------------------------------------------------------------------------
# Pallas kernel: full forward pass (GRU over T steps + MLP + fused heads + a*z+b)
# -----------------------------------------------------------------------------
def _dlow_kernel(cond_ref,      # (T*BP, CP)       time-major rows, batch+feature padded
                 w_gru_ref,     # (CP+GP+16, 3*GP) packed w_ih | w_hh | b_ih | b_hh
                 w_mlp_hbm,     # (MLP_ROWS, WMW)  left in HBM (pl.ANY), DMA'd manually
                 z_ref,         # (BP, NKP)        tiled noise, lane/batch padded
                 out_ref,       # (BP, 3*NKP)      fused output slab Z | a | b
                 gi_ref,        # scratch (T*BP, 3*GP)
                 w_mlp_ref,     # scratch (MLP_ROWS, WMW) VMEM destination for w_mlp
                 mlp_sem,       # DMA semaphore
                 *, cfg: DlowCfg, T: int, BP: int):
    GP, NKP = cfg.GP, cfg.NKP
    G3 = 3 * GP

    # ---- MLP/head weights are not needed until after the recurrence: start their
    #      DMA now and hide it behind the hoisted projection + GRU loop.
    mlp_cp = pltpu.make_async_copy(w_mlp_hbm, w_mlp_ref, mlp_sem)
    mlp_cp.start()

    # ---- static views of the packed GRU buffer (row offsets are x8 aligned)
    w_ih = w_gru_ref[0:cfg.CP, :]                                  # (CP, 3*GP), full block
    w_hh = w_gru_ref[cfg.R_WHH:cfg.R_WHH + GP, :]                  # (GP, 3*GP)
    b_ih = w_gru_ref[cfg.R_BIH:cfg.R_BIH + 1, :]                   # (1, 3*GP)
    # hoist the bias broadcast out of the (unrolled) loop
    b_hh = jnp.broadcast_to(w_gru_ref[cfg.R_BHH:cfg.R_BHH + 1, :], (BP, G3))

    # ---- hoisted input projection: ALL T timesteps in one MXU matmul (off h-chain)
    gi_ref[...] = (jnp.dot(cond_ref[...], w_ih,
                           preferred_element_type=jnp.float32) + b_ih)   # (T*BP, 3*GP)

    # ---- serial GRU recurrence: only h @ W_hh remains on the critical path.
    #      Each gate lives in its own 128-lane block -> all slices are vreg-aligned.
    #      r and z sigmoids are fused into one tanh-based transcendental (one EUP
    #      push over 2*GP lanes instead of two exp/divide-based sigmoids).
    def gru_step(t, h):
        row = pl.multiple_of(t * BP, BP)
        gi = gi_ref[pl.ds(row, BP), :]                                   # (BP, 3*GP)
        gh = jnp.dot(h, w_hh, preferred_element_type=jnp.float32) + b_hh
        x_rz = gi[:, 0:2 * GP] + gh[:, 0:2 * GP]
        rz = 0.5 * (jnp.tanh(0.5 * x_rz) + 1.0)       # == sigmoid, single EUP op
        r = rz[:, 0:GP]
        zg = rz[:, GP:2 * GP]
        n = jnp.tanh(gi[:, 2 * GP:G3] + r * gh[:, 2 * GP:G3])
        # padded-lane invariant: gi = gh = 0 there -> rz = 0.5, n = 0, so padded
        # lanes of h stay exactly 0 every step.
        return (1.0 - zg) * n + zg * h                                   # PyTorch GRU update

    h0 = jnp.zeros((BP, GP), jnp.float32)
    unroll = True if T <= 32 else 8     # full unroll only while T stays small/static
    h = lax.fori_loop(0, T, gru_step, h0, unroll=unroll)

    # ---- the MLP/head weight DMA has been in flight for the whole recurrence
    mlp_cp.wait()

    NH1L, NH2L = cfg.NH1L, cfg.NH2L
    w1 = w_mlp_ref[0:GP, 0:NH1L]
    b1 = w_mlp_ref[cfg.R_B1:cfg.R_B1 + 1, 0:NH1L]
    w2 = w_mlp_ref[cfg.R_W2:cfg.R_W2 + NH1L, 0:NH2L]
    b2 = w_mlp_ref[cfg.R_B2:cfg.R_B2 + 1, 0:NH2L]
    wab = w_mlp_ref[cfg.R_WAB:cfg.R_WAB + NH2L, 0:2 * NKP]
    bab = w_mlp_ref[cfg.R_BAB:cfg.R_BAB + 1, 0:2 * NKP]

    # MLP (tanh) + fused a|b heads (single MXU op); padded lanes stay exactly 0.
    h1 = jnp.tanh(jnp.dot(h, w1, preferred_element_type=jnp.float32) + b1)
    h2 = jnp.tanh(jnp.dot(h1, w2, preferred_element_type=jnp.float32) + b2)
    ab = jnp.dot(h2, wab, preferred_element_type=jnp.float32) + bab      # (BP, 2*NKP)

    a = ab[:, 0:NKP]                       # aligned lane-block slices
    b = ab[:, NKP:2 * NKP]
    out_ref[:, 0:NKP] = a * z_ref[...] + b          # Z
    out_ref[:, NKP:2 * NKP] = a
    out_ref[:, 2 * NKP:3 * NKP] = b


# -----------------------------------------------------------------------------
# One-time parameter packing (host side): gate-block padding + packed buffers
# -----------------------------------------------------------------------------
def pack_params(p, *, cond_channels, x_channels, n_sample, nh_rnn, nh_mlp):
    C, H = cond_channels, nh_rnn
    nh1, nh2 = nh_mlp
    nk_nz = n_sample * x_channels
    CP = _round_up(C, 8)
    GP = _round_up(H, 128)
    NKP = _round_up(nk_nz, 128)
    NH1L = _round_up(nh1, 128)
    NH2L = _round_up(nh2, 128)
    WMW = max(NH1L, NH2L, 2 * NKP)
    f32 = jnp.float32

    def pad_gates(w, rows_out):
        # (rows_in, 3*H), gate order r|z|n -> (rows_out, 3*GP): one 128-lane block per gate
        rows_in = w.shape[0]
        out = jnp.zeros((rows_out, 3 * GP), f32)
        for g in range(3):
            out = out.at[:rows_in, g * GP:g * GP + H].set(
                w[:, g * H:(g + 1) * H].astype(f32))
        return out

    w_gru = jnp.concatenate([
        pad_gates(p["w_ih_t"], CP),       # rows [0, CP)
        pad_gates(p["w_hh_t"], GP),       # rows [CP, CP+GP)
        pad_gates(p["b_ih"], 8),          # row  CP+GP
        pad_gates(p["b_hh"], 8),          # row  CP+GP+8
    ], axis=0)

    # MLP / heads: every block gets a full 128-lane-multiple width (zeros padded)
    w1 = jnp.zeros((GP, WMW), f32).at[:H, :nh1].set(p["w1"].astype(f32))
    b1 = jnp.zeros((8, WMW), f32).at[:1, :nh1].set(p["b1"].astype(f32))
    w2 = jnp.zeros((NH1L, WMW), f32).at[:nh1, :nh2].set(p["w2"].astype(f32))
    b2 = jnp.zeros((8, WMW), f32).at[:1, :nh2].set(p["b2"].astype(f32))
    wab = (jnp.zeros((NH2L, WMW), f32)
           .at[:nh2, 0:nk_nz].set(p["wa"].astype(f32))
           .at[:nh2, NKP:NKP + nk_nz].set(p["wb"].astype(f32)))
    bab = (jnp.zeros((8, WMW), f32)
           .at[:1, 0:nk_nz].set(p["ba"].astype(f32))
           .at[:1, NKP:NKP + nk_nz].set(p["bb"].astype(f32)))
    w_mlp = jnp.concatenate([w1, b1, w2, b2, wab, bab], axis=0)

    cfg = DlowCfg(
        C=C, H=H, nh1=nh1, nh2=nh2,
        n_sample=n_sample, x_channels=x_channels, nk_nz=nk_nz,
        CP=CP, GP=GP, NKP=NKP, NH1L=NH1L, NH2L=NH2L, WMW=WMW,
        MLP_ROWS=GP + 8 + NH1L + 8 + NH2L + 8,
        R_WHH=CP, R_BIH=CP + GP, R_BHH=CP + GP + 8,
        R_B1=GP, R_W2=GP + 8, R_B2=GP + 8 + NH1L,
        R_WAB=GP + 16 + NH1L, R_BAB=GP + 16 + NH1L + NH2L,
    )
    return {"w_gru": w_gru, "w_mlp": w_mlp}, cfg


# -----------------------------------------------------------------------------
# Wrapper (jit'ed layout glue: transpose / batch+lane padding / split outputs)
# -----------------------------------------------------------------------------
@functools.partial(jax.jit, static_argnums=(2,))
def model_dlow_forward(cond, packed, cfg, z_noise):
    """cond: (B, cond_channels, T) float32;  z_noise: (B, x_channels) float32."""
    B, C, T = cond.shape
    assert C == cfg.C
    BP = _round_up(B, 8)                      # fill all 8 sublanes of every vreg

    # v7x VMEM guard (64 MiB/TC): for long sequences / big batches, chunk the
    # hoisted input projection over time blocks into a rotating scratch instead.
    gi_bytes = T * BP * 3 * cfg.GP * 4
    assert gi_bytes <= 24 * (1 << 20), (
        "gi scratch too large for VMEM; chunk the hoisted input projection over time")

    cond_tbc = jnp.transpose(cond, (2, 0, 1)).astype(jnp.float32)              # (T, B, C)
    cond_p = jnp.zeros((T, BP, cfg.CP), jnp.float32).at[:, :B, :C].set(cond_tbc)
    cond_p = cond_p.reshape(T * BP, cfg.CP)                                    # time-major rows

    # z repeated per sample == torch `z.repeat(1, nSample)` then view(B, nk, nz)
    z_tiled = jnp.tile(z_noise.astype(jnp.float32), (1, cfg.n_sample))         # (B, nk*nz)
    z_p = jnp.zeros((BP, cfg.NKP), jnp.float32).at[:B, :cfg.nk_nz].set(z_tiled)

    kernel = functools.partial(_dlow_kernel, cfg=cfg, T=T, BP=BP)
    vmem = pl.BlockSpec(memory_space=pltpu.MemorySpace.VMEM)
    out = pl.pallas_call(
        kernel,
        out_shape=jax.ShapeDtypeStruct((BP, 3 * cfg.NKP), jnp.float32),
        in_specs=[vmem,                                   # cond (auto VMEM DMA)
                  vmem,                                   # packed GRU weights
                  pl.BlockSpec(memory_space=pl.ANY),      # packed MLP weights stay in HBM
                  vmem],                                  # tiled noise
        out_specs=vmem,
        scratch_shapes=[
            pltpu.VMEM((T * BP, 3 * cfg.GP), jnp.float32),      # gi (hoisted projection)
            pltpu.VMEM((cfg.MLP_ROWS, cfg.WMW), jnp.float32),   # w_mlp landing buffer
            pltpu.SemaphoreType.DMA(()),                        # w_mlp DMA semaphore
        ],
    )(cond_p, packed["w_gru"], packed["w_mlp"], z_p)

    Z = out[:B, 0:cfg.nk_nz]
    a = out[:B, cfg.NKP:cfg.NKP + cfg.nk_nz]
    b = out[:B, 2 * cfg.NKP:2 * cfg.NKP + cfg.nk_nz]
    rs = lambda v: v.reshape(B, cfg.n_sample, cfg.x_channels)
    return rs(Z), rs(a), rs(b)


# -----------------------------------------------------------------------------
# Deterministic parameter construction (shapes implied by the module __init__)
# -----------------------------------------------------------------------------
def init_params(key, cond_channels, x_channels, n_sample, nh_rnn, nh_mlp):
    ks = jax.random.split(key, 12)
    H, nh1, nh2 = nh_rnn, nh_mlp[0], nh_mlp[1]
    nk_nz = n_sample * x_channels

    def u(k, shape, fan):
        bound = 1.0 / jnp.sqrt(fan)
        return jax.random.uniform(k, shape, jnp.float32, -bound, bound)

    return {
        # GRU weights, stored transposed, gate order r|z|n (PyTorch convention)
        "w_ih_t": u(ks[0], (cond_channels, 3 * H), H),
        "w_hh_t": u(ks[1], (H, 3 * H), H),
        "b_ih":   u(ks[2], (1, 3 * H), H),
        "b_hh":   u(ks[3], (1, 3 * H), H),
        # MLP nh_mlp with tanh
        "w1": u(ks[4], (H, nh1), H),     "b1": u(ks[5], (1, nh1), H),
        "w2": u(ks[6], (nh1, nh2), nh1), "b2": u(ks[7], (1, nh2), nh1),
        # heads: a, b of size nSample * x_channels
        "wa": u(ks[8],  (nh2, nk_nz), nh2), "ba": u(ks[9],  (1, nk_nz), nh2),
        "wb": u(ks[10], (nh2, nk_nz), nh2), "bb": u(ks[11], (1, nk_nz), nh2),
    }


# -----------------------------------------------------------------------------
# Pure-JAX reference (same math, unpadded) for a correctness check
# -----------------------------------------------------------------------------
def reference_forward(cond, p, z_noise, n_sample, x_channels):
    x = jnp.transpose(cond, (2, 0, 1)).astype(jnp.float32)
    T, B, _ = x.shape
    H = p["w_hh_t"].shape[0]
    h = jnp.zeros((B, H), jnp.float32)
    for t in range(T):
        gi = x[t] @ p["w_ih_t"] + p["b_ih"]
        gh = h @ p["w_hh_t"] + p["b_hh"]
        r = jax.nn.sigmoid(gi[:, :H] + gh[:, :H])
        zg = jax.nn.sigmoid(gi[:, H:2 * H] + gh[:, H:2 * H])
        n = jnp.tanh(gi[:, 2 * H:] + r * gh[:, 2 * H:])
        h = (1.0 - zg) * n + zg * h
    h1 = jnp.tanh(h @ p["w1"] + p["b1"])
    h2 = jnp.tanh(h1 @ p["w2"] + p["b2"])
    a = h2 @ p["wa"] + p["ba"]
    b = h2 @ p["wb"] + p["bb"]
    z_t = jnp.tile(z_noise, (1, n_sample))
    Z = a * z_t + b
    rs = lambda v: v.reshape(B, n_sample, x_channels)
    return rs(Z), rs(a), rs(b)


if __name__ == "__main__":
    # Small, module-consistent shapes
    B = 2                  # batch
    cond_channels = 4      # conditioning feature dim (input_size)
    T = 16                 # conditioning sequence length
    x_channels = 8         # gaussian_size / nz
    n_sample = 10          # nSample (nk)
    nh_rnn = 32            # GRU hidden
    nh_mlp = (64, 32)      # MLP hidden layers

    key = jax.random.PRNGKey(0)
    k_param, k_cond, k_noise = jax.random.split(key, 3)

    params = init_params(k_param, cond_channels, x_channels, n_sample, nh_rnn, nh_mlp)
    packed, cfg = pack_params(params, cond_channels=cond_channels, x_channels=x_channels,
                              n_sample=n_sample, nh_rnn=nh_rnn, nh_mlp=nh_mlp)

    cond = jax.random.normal(k_cond, (B, cond_channels, T), jnp.float32)   # PyTorch NCW
    z_noise = jax.random.normal(k_noise, (B, x_channels), jnp.float32)

    Z, a, b = model_dlow_forward(cond, packed, cfg, z_noise)
    jax.block_until_ready((Z, a, b))

    Z_ref, a_ref, b_ref = reference_forward(cond, params, z_noise, n_sample, x_channels)
    assert Z.shape == (B, n_sample, x_channels)
    assert a.shape == (B, n_sample, x_channels)
    assert b.shape == (B, n_sample, x_channels)
    assert jnp.allclose(Z, Z_ref, atol=1e-4), "Z mismatch vs reference"
    assert jnp.allclose(a, a_ref, atol=1e-4), "a mismatch vs reference"
    assert jnp.allclose(b, b_ref, atol=1e-4), "b mismatch vs reference"

    print("KERNEL_OK")
</pallas_src>

<mosaic_0001>
module attributes {stable_mosaic.version = 11 : i64} {
  func.func @_dlow_kernel(%arg0: memref<128x8xf32, #tpu.memory_space<vmem>>, %arg1: memref<152x384xf32, #tpu.memory_space<vmem>>, %arg2: memref<408x256xf32, #tpu.memory_space<any>>, %arg3: memref<8x128xf32, #tpu.memory_space<vmem>>, %arg4: memref<8x384xf32, #tpu.memory_space<vmem>>, %arg5: memref<128x384xf32, #tpu.memory_space<vmem>>, %arg6: memref<408x256xf32, #tpu.memory_space<vmem>>, %arg7: memref<!tpu.dma_semaphore, #tpu.memory_space<semaphore_mem>>) attributes {dimension_semantics = [], scalar_prefetch = 0 : i64, scratch_operands = 3 : i64, tpu.core_type = #tpu.core_type<tc>} {
    tpu.enqueue_dma source(%arg2 : memref<408x256xf32, #tpu.memory_space<any>>) target(%arg6 : memref<408x256xf32, #tpu.memory_space<vmem>>) target_semaphore(%arg7 : memref<!tpu.dma_semaphore, #tpu.memory_space<semaphore_mem>>)
    %c0 = arith.constant 0 : index
    %c0_0 = arith.constant 0 : index
    %0 = vector.load %arg1[%c0, %c0_0] : memref<152x384xf32, #tpu.memory_space<vmem>>, vector<8x384xf32>
    %c8 = arith.constant 8 : index
    %c0_1 = arith.constant 0 : index
    %1 = vector.load %arg1[%c8, %c0_1] : memref<152x384xf32, #tpu.memory_space<vmem>>, vector<128x384xf32>
    %c136 = arith.constant 136 : index
    %c0_2 = arith.constant 0 : index
    %2 = vector.load %arg1[%c136, %c0_2] : memref<152x384xf32, #tpu.memory_space<vmem>>, vector<1x384xf32>
    %c144 = arith.constant 144 : index
    %c0_3 = arith.constant 0 : index
    %3 = vector.load %arg1[%c144, %c0_3] : memref<152x384xf32, #tpu.memory_space<vmem>>, vector<1x384xf32>
    %4 = vector.shape_cast %3 : vector<1x384xf32> to vector<1x384xf32>
    %5 = vector.broadcast %4 : vector<1x384xf32> to vector<8x384xf32>
    %c0_4 = arith.constant 0 : index
    %c0_5 = arith.constant 0 : index
    %6 = vector.load %arg0[%c0_4, %c0_5] : memref<128x8xf32, #tpu.memory_space<vmem>>, vector<128x8xf32>
    %cst = arith.constant dense<0.000000e+00> : vector<128x384xf32>
    %7 = tpu.matmul %6, %0, %cst {dimension_numbers = #tpu.dot_dimension_numbers<[1], [0], [0], [1], [0, 0, 1, 1], [], []>} : vector<128x8xf32>, vector<8x384xf32>, vector<128x384xf32> -> vector<128x384xf32>
    %8 = vector.broadcast %2 : vector<1x384xf32> to vector<128x384xf32>
    %9 = arith.addf %7, %8 : vector<128x384xf32>
    %c0_6 = arith.constant 0 : index
    %c0_7 = arith.constant 0 : index
    %10 = vector.load %arg5[%c0_6, %c0_7] : memref<128x384xf32, #tpu.memory_space<vmem>>, vector<128x384xf32>
    tpu.vector_store %arg5[%c0_6, %c0_7], %9 {strides = array<i32>} : memref<128x384xf32, #tpu.memory_space<vmem>>, vector<128x384xf32>,
    %cst_8 = arith.constant 0.000000e+00 : f32
    %11 = vector.broadcast %cst_8 : f32 to vector<8x128xf32>
    %c0_i32 = arith.constant 0 : i32
    %c8_i32 = arith.constant 8 : i32
    %12 = arith.muli %c0_i32, %c8_i32 : i32
    %13 = tpu.assume_multiple %12, 8 : i32
    %14 = arith.index_cast %13 : i32 to index
    %c0_9 = arith.constant 0 : index
    %15 = vector.load %arg5[%14, %c0_9] : memref<128x384xf32, #tpu.memory_space<vmem>>, vector<8x384xf32>
    %cst_10 = arith.constant dense<0.000000e+00> : vector<8x384xf32>
    %16 = tpu.matmul %11, %1, %cst_10 {dimension_numbers = #tpu.dot_dimension_numbers<[1], [0], [0], [1], [0, 0, 1, 1], [], []>} : vector<8x128xf32>, vector<128x384xf32>, vector<8x384xf32> -> vector<8x384xf32>
    %17 = arith.addf %16, %5 : vector<8x384xf32>
    %18 = vector.extract_strided_slice %15 {offsets = [0, 0], sizes = [8, 256], strides = [1, 1]} : vector<8x384xf32> to vector<8x256xf32>
    %19 = vector.extract_strided_slice %17 {offsets = [0, 0], sizes = [8, 256], strides = [1, 1]} : vector<8x384xf32> to vector<8x256xf32>
    %20 = arith.addf %18, %19 : vector<8x256xf32>
    %cst_11 = arith.constant 5.000000e-01 : f32
    %21 = vector.broadcast %cst_11 : f32 to vector<8x256xf32>
    %22 = arith.mulf %21, %20 : vector<8x256xf32>
    %23 = math.tanh %22 : vector<8x256xf32>
    %cst_12 = arith.constant 1.000000e+00 : f32
    %24 = vector.broadcast %cst_12 : f32 to vector<8x256xf32>
    %25 = arith.addf %23, %24 : vector<8x256xf32>
    %cst_13 = arith.constant 5.000000e-01 : f32
    %26 = vector.broadcast %cst_13 : f32 to vector<8x256xf32>
    %27 = arith.mulf %26, %25 : vector<8x256xf32>
    %28 = vector.extract_strided_slice %27 {offsets = [0, 0], sizes = [8, 128], strides = [1, 1]} : vector<8x256xf32> to vector<8x128xf32>
    %29 = vector.extract_strided_slice %27 {offsets = [0, 128], sizes = [8, 128], strides = [1, 1]} : vector<8x256xf32> to vector<8x128xf32>
    %30 = vector.extract_strided_slice %15 {offsets = [0, 256], sizes = [8, 128], strides = [1, 1]} : vector<8x384xf32> to vector<8x128xf32>
    %31 = vector.extract_strided_slice %17 {offsets = [0, 256], sizes = [8, 128], strides = [1, 1]} : vector<8x384xf32> to vector<8x128xf32>
    %32 = arith.mulf %28, %31 : vector<8x128xf32>
    %33 = arith.addf %30, %32 : vector<8x128xf32>
    %34 = math.tanh %33 : vector<8x128xf32>
    %cst_14 = arith.constant 1.000000e+00 : f32
    %35 = vector.broadcast %cst_14 : f32 to vector<8x128xf32>
    %36 = arith.subf %35, %29 : vector<8x128xf32>
    %37 = arith.mulf %36, %34 : vector<8x128xf32>
    %38 = arith.mulf %29, %11 : vector<8x128xf32>
    %39 = arith.addf %37, %38 : vector<8x128xf32>
    %c1_i32 = arith.constant 1 : i32
    %c8_i32_15 = arith.constant 8 : i32
    %40 = arith.muli %c1_i32, %c8_i32_15 : i32
    %41 = tpu.assume_multiple %40, 8 : i32
    %42 = arith.index_cast %41 : i32 to index
    %c0_16 = arith.constant 0 : index
    %43 = vector.load %arg5[%42, %c0_16] : memref<128x384xf32, #tpu.memory_space<vmem>>, vector<8x384xf32>
    %cst_17 = arith.constant dense<0.000000e+00> : vector<8x384xf32>
    %44 = tpu.matmul %39, %1, %cst_17 {dimension_numbers = #tpu.dot_dimension_numbers<[1], [0], [0], [1], [0, 0, 1, 1], [], []>} : vector<8x128xf32>, vector<128x384xf32>, vector<8x384xf32> -> vector<8x384xf32>
    %45 = arith.addf %44, %5 : vector<8x384xf32>
    %46 = vector.extract_strided_slice %43 {offsets = [0, 0], sizes = [8, 256], strides = [1, 1]} : vector<8x384xf32> to vector<8x256xf32>
    %47 = vector.extract_strided_slice %45 {offsets = [0, 0], sizes = [8, 256], strides = [1, 1]} : vector<8x384xf32> to vector<8x256xf32>
    %48 = arith.addf %46, %47 : vector<8x256xf32>
    %cst_18 = arith.constant 5.000000e-01 : f32
    %49 = vector.broadcast %cst_18 : f32 to vector<8x256xf32>
    %50 = arith.mulf %49, %48 : vector<8x256xf32>
    %51 = math.tanh %50 : vector<8x256xf32>
    %cst_19 = arith.constant 1.000000e+00 : f32
    %52 = vector.broadcast %cst_19 : f32 to vector<8x256xf32>
    %53 = arith.addf %51, %52 : vector<8x256xf32>
    %cst_20 = arith.constant 5.000000e-01 : f32
    %54 = vector.broadcast %cst_20 : f32 to vector<8x256xf32>
    %55 = arith.mulf %54, %53 : vector<8x256xf32>
    %56 = vector.extract_strided_slice %55 {offsets = [0, 0], sizes = [8, 128], strides = [1, 1]} : vector<8x256xf32> to vector<8x128xf32>
    %57 = vector.extract_strided_slice %55 {offsets = [0, 128], sizes = [8, 128], strides = [1, 1]} : vector<8x256xf32> to vector<8x128xf32>
    %58 = vector.extract_strided_slice %43 {offsets = [0, 256], sizes = [8, 128], strides = [1, 1]} : vector<8x384xf32> to vector<8x128xf32>
    %59 = vector.extract_strided_slice %45 {offsets = [0, 256], sizes = [8, 128], strides = [1, 1]} : vector<8x384xf32> to vector<8x128xf32>
    %60 = arith.mulf %56, %59 : vector<8x128xf32>
    %61 = arith.addf %58, %60 : vector<8x128xf32>
    %62 = math.tanh %61 : vector<8x128xf32>
    %cst_21 = arith.constant 1.000000e+00 : f32
    %63 = vector.broadcast %cst_21 : f32 to vector<8x128xf32>
    %64 = arith.subf %63, %57 : vector<8x128xf32>
    %65 = arith.mulf %64, %62 : vector<8x128xf32>
    %66 = arith.mulf %57, %39 : vector<8x128xf32>
    %67 = arith.addf %65, %66 : vector<8x128xf32>
    %c2_i32 = arith.constant 2 : i32
    %c8_i32_22 = arith.constant 8 : i32
    %68 = arith.muli %c2_i32, %c8_i32_22 : i32
    %69 = tpu.assume_multiple %68, 8 : i32
    %70 = arith.index_cast %69 : i32 to index
    %c0_23 = arith.constant 0 : index
    %71 = vector.load %arg5[%70, %c0_23] : memref<128x384xf32, #tpu.memory_space<vmem>>, vector<8x384xf32>
    %cst_24 = arith.constant dense<0.000000e+00> : vector<8x384xf32>
    %72 = tpu.matmul %67, %1, %cst_24 {dimension_numbers = #tpu.dot_dimension_numbers<[1], [0], [0], [1], [0, 0, 1, 1], [], []>} : vector<8x128xf32>, vector<128x384xf32>, vector<8x384xf32> -> vector<8x384xf32>
    %73 = arith.addf %72, %5 : vector<8x384xf32>
    %74 = vector.extract_strided_slice %71 {offsets = [0, 0], sizes = [8, 256], strides = [1, 1]} : vector<8x384xf32> to vector<8x256xf32>
    %75 = vector.extract_strided_slice %73 {offsets = [0, 0], sizes = [8, 256], strides = [1, 1]} : vector<8x384xf32> to vector<8x256xf32>
    %76 = arith.addf %74, %75 : vector<8x256xf32>
    %cst_25 = arith.constant 5.000000e-01 : f32
    %77 = vector.broadcast %cst_25 : f32 to vector<8x256xf32>
    %78 = arith.mulf %77, %76 : vector<8x256xf32>
    %79 = math.tanh %78 : vector<8x256xf32>
    %cst_26 = arith.constant 1.000000e+00 : f32
    %80 = vector.broadcast %cst_26 : f32 to vector<8x256xf32>
    %81 = arith.addf %79, %80 : vector<8x256xf32>
    %cst_27 = arith.constant 5.000000e-01 : f32
    %82 = vector.broadcast %cst_27 : f32 to vector<8x256xf32>
    %83 = arith.mulf %82, %81 : vector<8x256xf32>
    %84 = vector.extract_strided_slice %83 {offsets = [0, 0], sizes = [8, 128], strides = [1, 1]} : vector<8x256xf32> to vector<8x128xf32>
    %85 = vector.extract_strided_slice %83 {offsets = [0, 128], sizes = [8, 128], strides = [1, 1]} : vector<8x256xf32> to vector<8x128xf32>
    %86 = vector.extract_strided_slice %71 {offsets = [0, 256], sizes = [8, 128], strides = [1, 1]} : vector<8x384xf32> to vector<8x128xf32>
    %87 = vector.extract_strided_slice %73 {offsets = [0, 256], sizes = [8, 128], strides = [1, 1]} : vector<8x384xf32> to vector<8x128xf32>
    %88 = arith.mulf %84, %87 : vector<8x128xf32>
    %89 = arith.addf %86, %88 : vector<8x128xf32>
    %90 = math.tanh %89 : vector<8x128xf32>
    %cst_28 = arith.constant 1.000000e+00 : f32
    %91 = vector.broadcast %cst_28 : f32 to vector<8x128xf32>
    %92 = arith.subf %91, %85 : vector<8x128xf32>
    %93 = arith.mulf %92, %90 : vector<8x128xf32>
    %94 = arith.mulf %85, %67 : vector<8x128xf32>
    %95 = arith.addf %93, %94 : vector<8x128xf32>
    %c3_i32 = arith.constant 3 : i32
    %c8_i32_29 = arith.constant 8 : i32
    %96 = arith.muli %c3_i32, %c8_i32_29 : i32
    %97 = tpu.assume_multiple %96, 8 : i32
    %98 = arith.index_cast %97 : i32 to index
    %c0_30 = arith.constant 0 : index
    %99 = vector.load %arg5[%98, %c0_30] : memref<128x384xf32, #tpu.memory_space<vmem>>, vector<8x384xf32>
    %cst_31 = arith.constant dense<0.000000e+00> : vector<8x384xf32>
    %100 = tpu.matmul %95, %1, %cst_31 {dimension_numbers = #tpu.dot_dimension_numbers<[1], [0], [0], [1], [0, 0, 1, 1], [], []>} : vector<8x128xf32>, vector<128x384xf32>, vector<8x384xf32> -> vector<8x384xf32>
    %101 = arith.addf %100, %5 : vector<8x384xf32>
    %102 = vector.extract_strided_slice %99 {offsets = [0, 0], sizes = [8, 256], strides = [1, 1]} : vector<8x384xf32> to vector<8x256xf32>
    %103 = vector.extract_strided_slice %101 {offsets = [0, 0], sizes = [8, 256], strides = [1, 1]} : vector<8x384xf32> to vector<8x256xf32>
    %104 = arith.addf %102, %103 : vector<8x256xf32>
    %cst_32 = arith.constant 5.000000e-01 : f32
    %105 = vector.broadcast %cst_32 : f32 to vector<8x256xf32>
    %106 = arith.mulf %105, %104 : vector<8x256xf32>
    %107 = math.tanh %106 : vector<8x256xf32>
    %cst_33 = arith.constant 1.000000e+00 : f32
    %108 = vector.broadcast %cst_33 : f32 to vector<8x256xf32>
    %109 = arith.addf %107, %108 : vector<8x256xf32>
    %cst_34 = arith.constant 5.000000e-01 : f32
    %110 = vector.broadcast %cst_34 : f32 to vector<8x256xf32>
    %111 = arith.mulf %110, %109 : vector<8x256xf32>
    %112 = vector.extract_strided_slice %111 {offsets = [0, 0], sizes = [8, 128], strides = [1, 1]} : vector<8x256xf32> to vector<8x128xf32>
    %113 = vector.extract_strided_slice %111 {offsets = [0, 128], sizes = [8, 128], strides = [1, 1]} : vector<8x256xf32> to vector<8x128xf32>
    %114 = vector.extract_strided_slice %99 {offsets = [0, 256], sizes = [8, 128], strides = [1, 1]} : vector<8x384xf32> to vector<8x128xf32>
    %115 = vector.extract_strided_slice %101 {offsets = [0, 256], sizes = [8, 128], strides = [1, 1]} : vector<8x384xf32> to vector<8x128xf32>
    %116 = arith.mulf %112, %115 : vector<8x128xf32>
    %117 = arith.addf %114, %116 : vector<8x128xf32>
    %118 = math.tanh %117 : vector<8x128xf32>
    %cst_35 = arith.constant 1.000000e+00 : f32
    %119 = vector.broadcast %cst_35 : f32 to vector<8x128xf32>
    %120 = arith.subf %119, %113 : vector<8x128xf32>
    %121 = arith.mulf %120, %118 : vector<8x128xf32>
    %122 = arith.mulf %113, %95 : vector<8x128xf32>
    %123 = arith.addf %121, %122 : vector<8x128xf32>
    %c4_i32 = arith.constant 4 : i32
    %c8_i32_36 = arith.constant 8 : i32
    %124 = arith.muli %c4_i32, %c8_i32_36 : i32
    %125 = tpu.assume_multiple %124, 8 : i32
    %126 = arith.index_cast %125 : i32 to index
    %c0_37 = arith.constant 0 : index
    %127 = vector.load %arg5[%126, %c0_37] : memref<128x384xf32, #tpu.memory_space<vmem>>, vector<8x384xf32>
    %cst_38 = arith.constant dense<0.000000e+00> : vector<8x384xf32>
    %128 = tpu.matmul %123, %1, %cst_38 {dimension_numbers = #tpu.dot_dimension_numbers<[1], [0], [0], [1], [0, 0, 1, 1], [], []>} : vector<8x128xf32>, vector<128x384xf32>, vector<8x384xf32> -> vector<8x384xf32>
    %129 = arith.addf %128, %5 : vector<8x384xf32>
    %130 = vector.extract_strided_slice %127 {offsets = [0, 0], sizes = [8, 256], strides = [1, 1]} : vector<8x384xf32> to vector<8x256xf32>
    %131 = vector.extract_strided_slice %129 {offsets = [0, 0], sizes = [8, 256], strides = [1, 1]} : vector<8x384xf32> to vector<8x256xf32>
    %132 = arith.addf %130, %131 : vector<8x256xf32>
    %cst_39 = arith.constant 5.000000e-01 : f32
    %133 = vector.broadcast %cst_39 : f32 to vector<8x256xf32>
    %134 = arith.mulf %133, %132 : vector<8x256xf32>
    %135 = math.tanh %134 : vector<8x256xf32>
    %cst_40 = arith.constant 1.000000e+00 : f32
    %136 = vector.broadcast %cst_40 : f32 to vector<8x256xf32>
    %137 = arith.addf %135, %136 : vector<8x256xf32>
    %cst_41 = arith.constant 5.000000e-01 : f32
    %138 = vector.broadcast %cst_41 : f32 to vector<8x256xf32>
    %139 = arith.mulf %138, %137 : vector<8x256xf32>
    %140 = vector.extract_strided_slice %139 {offsets = [0, 0], sizes = [8, 128], strides = [1, 1]} : vector<8x256xf32> to vector<8x128xf32>
    %141 = vector.extract_strided_slice %139 {offsets = [0, 128], sizes = [8, 128], strides = [1, 1]} : vector<8x256xf32> to vector<8x128xf32>
    %142 = vector.extract_strided_slice %127 {offsets = [0, 256], sizes = [8, 128], strides = [1, 1]} : vector<8x384xf32> to vector<8x128xf32>
    %143 = vector.extract_strided_slice %129 {offsets = [0, 256], sizes = [8, 128], strides = [1, 1]} : vector<8x384xf32> to vector<8x128xf32>
    %144 = arith.mulf %140, %143 : vector<8x128xf32>
    %145 = arith.addf %142, %144 : vector<8x128xf32>
    %146 = math.tanh %145 : vector<8x128xf32>
    %cst_42 = arith.constant 1.000000e+00 : f32
    %147 = vector.broadcast %cst_42 : f32 to vector<8x128xf32>
    %148 = arith.subf %147, %141 : vector<8x128xf32>
    %149 = arith.mulf %148, %146 : vector<8x128xf32>
    %150 = arith.mulf %141, %123 : vector<8x128xf32>
    %151 = arith.addf %149, %150 : vector<8x128xf32>
    %c5_i32 = arith.constant 5 : i32
    %c8_i32_43 = arith.constant 8 : i32
    %152 = arith.muli %c5_i32, %c8_i32_43 : i32
    %153 = tpu.assume_multiple %152, 8 : i32
    %154 = arith.index_cast %153 : i32 to index
    %c0_44 = arith.constant 0 : index
    %155 = vector.load %arg5[%154, %c0_44] : memref<128x384xf32, #tpu.memory_space<vmem>>, vector<8x384xf32>
    %cst_45 = arith.constant dense<0.000000e+00> : vector<8x384xf32>
    %156 = tpu.matmul %151, %1, %cst_45 {dimension_numbers = #tpu.dot_dimension_numbers<[1], [0], [0], [1], [0, 0, 1, 1], [], []>} : vector<8x128xf32>, vector<128x384xf32>, vector<8x384xf32> -> vector<8x384xf32>
    %157 = arith.addf %156, %5 : vector<8x384xf32>
    %158 = vector.extract_strided_slice %155 {offsets = [0, 0], sizes = [8, 256], strides = [1, 1]} : vector<8x384xf32> to vector<8x256xf32>
    %159 = vector.extract_strided_slice %157 {offsets = [0, 0], sizes = [8, 256], strides = [1, 1]} : vector<8x384xf32> to vector<8x256xf32>
    %160 = arith.addf %158, %159 : vector<8x256xf32>
    %cst_46 = arith.constant 5.000000e-01 : f32
    %161 = vector.broadcast %cst_46 : f32 to vector<8x256xf32>
    %162 = arith.mulf %161, %160 : vector<8x256xf32>
    %163 = math.tanh %162 : vector<8x256xf32>
    %cst_47 = arith.constant 1.000000e+00 : f32
    %164 = vector.broadcast %cst_47 : f32 to vector<8x256xf32>
    %165 = arith.addf %163, %164 : vector<8x256xf32>
    %cst_48 = arith.constant 5.000000e-01 : f32
    %166 = vector.broadcast %cst_48 : f32 to vector<8x256xf32>
    %167 = arith.mulf %166, %165 : vector<8x256xf32>
    %168 = vector.extract_strided_slice %167 {offsets = [0, 0], sizes = [8, 128], strides = [1, 1]} : vector<8x256xf32> to vector<8x128xf32>
    %169 = vector.extract_strided_slice %167 {offsets = [0, 128], sizes = [8, 128], strides = [1, 1]} : vector<8x256xf32> to vector<8x128xf32>
    %170 = vector.extract_strided_slice %155 {offsets = [0, 256], sizes = [8, 128], strides = [1, 1]} : vector<8x384xf32> to vector<8x128xf32>
    %171 = vector.extract_strided_slice %157 {offsets = [0, 256], sizes = [8, 128], strides = [1, 1]} : vector<8x384xf32> to vector<8x128xf32>
    %172 = arith.mulf %168, %171 : vector<8x128xf32>
    %173 = arith.addf %170, %172 : vector<8x128xf32>
    %174 = math.tanh %173 : vector<8x128xf32>
    %cst_49 = arith.constant 1.000000e+00 : f32
    %175 = vector.broadcast %cst_49 : f32 to vector<8x128xf32>
    %176 = arith.subf %175, %169 : vector<8x128xf32>
    %177 = arith.mulf %176, %174 : vector<8x128xf32>
    %178 = arith.mulf %169, %151 : vector<8x128xf32>
    %179 = arith.addf %177, %178 : vector<8x128xf32>
    %c6_i32 = arith.constant 6 : i32
    %c8_i32_50 = arith.constant 8 : i32
    %180 = arith.muli %c6_i32, %c8_i32_50 : i32
    %181 = tpu.assume_multiple %180, 8 : i32
    %182 = arith.index_cast %181 : i32 to index
    %c0_51 = arith.constant 0 : index
    %183 = vector.load %arg5[%182, %c0_51] : memref<128x384xf32, #tpu.memory_space<vmem>>, vector<8x384xf32>
    %cst_52 = arith.constant dense<0.000000e+00> : vector<8x384xf32>
    %184 = tpu.matmul %179, %1, %cst_52 {dimension_numbers = #tpu.dot_dimension_numbers<[1], [0], [0], [1], [0, 0, 1, 1], [], []>} : vector<8x128xf32>, vector<128x384xf32>, vector<8x384xf32> -> vector<8x384xf32>
    %185 = arith.addf %184, %5 : vector<8x384xf32>
    %186 = vector.extract_strided_slice %183 {offsets = [0, 0], sizes = [8, 256], strides = [1, 1]} : vector<8x384xf32> to vector<8x256xf32>
    %187 = vector.extract_strided_slice %185 {offsets = [0, 0], sizes = [8, 256], strides = [1, 1]} : vector<8x384xf32> to vector<8x256xf32>
    %188 = arith.addf %186, %187 : vector<8x256xf32>
    %cst_53 = arith.constant 5.000000e-01 : f32
    %189 = vector.broadcast %cst_53 : f32 to vector<8x256xf32>
    %190 = arith.mulf %189, %188 : vector<8x256xf32>
    %191 = math.tanh %190 : vector<8x256xf32>
    %cst_54 = arith.constant 1.000000e+00 : f32
    %192 = vector.broadcast %cst_54 : f32 to vector<8x256xf32>
    %193 = arith.addf %191, %192 : vector<8x256xf32>
    %cst_55 = arith.constant 5.000000e-01 : f32
    %194 = vector.broadcast %cst_55 : f32 to vector<8x256xf32>
    %195 = arith.mulf %194, %193 : vector<8x256xf32>
    %196 = vector.extract_strided_slice %195 {offsets = [0, 0], sizes = [8, 128], strides = [1, 1]} : vector<8x256xf32> to vector<8x128xf32>
    %197 = vector.extract_strided_slice %195 {offsets = [0, 128], sizes = [8, 128], strides = [1, 1]} : vector<8x256xf32> to vector<8x128xf32>
    %198 = vector.extract_strided_slice %183 {offsets = [0, 256], sizes = [8, 128], strides = [1, 1]} : vector<8x384xf32> to vector<8x128xf32>
    %199 = vector.extract_strided_slice %185 {offsets = [0, 256], sizes = [8, 128], strides = [1, 1]} : vector<8x384xf32> to vector<8x128xf32>
    %200 = arith.mulf %196, %199 : vector<8x128xf32>
    %201 = arith.addf %198, %200 : vector<8x128xf32>
    %202 = math.tanh %201 : vector<8x128xf32>
    %cst_56 = arith.constant 1.000000e+00 : f32
    %203 = vector.broadcast %cst_56 : f32 to vector<8x128xf32>
    %204 = arith.subf %203, %197 : vector<8x128xf32>
    %205 = arith.mulf %204, %202 : vector<8x128xf32>
    %206 = arith.mulf %197, %179 : vector<8x128xf32>
    %207 = arith.addf %205, %206 : vector<8x128xf32>
    %c7_i32 = arith.constant 7 : i32
    %c8_i32_57 = arith.constant 8 : i32
    %208 = arith.muli %c7_i32, %c8_i32_57 : i32
    %209 = tpu.assume_multiple %208, 8 : i32
    %210 = arith.index_cast %209 : i32 to index
    %c0_58 = arith.constant 0 : index
    %211 = vector.load %arg5[%210, %c0_58] : memref<128x384xf32, #tpu.memory_space<vmem>>, vector<8x384xf32>
    %cst_59 = arith.constant dense<0.000000e+00> : vector<8x384xf32>
    %212 = tpu.matmul %207, %1, %cst_59 {dimension_numbers = #tpu.dot_dimension_numbers<[1], [0], [0], [1], [0, 0, 1, 1], [], []>} : vector<8x128xf32>, vector<128x384xf32>, vector<8x384xf32> -> vector<8x384xf32>
    %213 = arith.addf %212, %5 : vector<8x384xf32>
    %214 = vector.extract_strided_slice %211 {offsets = [0, 0], sizes = [8, 256], strides = [1, 1]} : vector<8x384xf32> to vector<8x256xf32>
    %215 = vector.extract_strided_slice %213 {offsets = [0, 0], sizes = [8, 256], strides = [1, 1]} : vector<8x384xf32> to vector<8x256xf32>
    %216 = arith.addf %214, %215 : vector<8x256xf32>
    %cst_60 = arith.constant 5.000000e-01 : f32
    %217 = vector.broadcast %cst_60 : f32 to vector<8x256xf32>
    %218 = arith.mulf %217, %216 : vector<8x256xf32>
    %219 = math.tanh %218 : vector<8x256xf32>
    %cst_61 = arith.constant 1.000000e+00 : f32
    %220 = vector.broadcast %cst_61 : f32 to vector<8x256xf32>
    %221 = arith.addf %219, %220 : vector<8x256xf32>
    %cst_62 = arith.constant 5.000000e-01 : f32
    %222 = vector.broadcast %cst_62 : f32 to vector<8x256xf32>
    %223 = arith.mulf %222, %221 : vector<8x256xf32>
    %224 = vector.extract_strided_slice %223 {offsets = [0, 0], sizes = [8, 128], strides = [1, 1]} : vector<8x256xf32> to vector<8x128xf32>
    %225 = vector.extract_strided_slice %223 {offsets = [0, 128], sizes = [8, 128], strides = [1, 1]} : vector<8x256xf32> to vector<8x128xf32>
    %226 = vector.extract_strided_slice %211 {offsets = [0, 256], sizes = [8, 128], strides = [1, 1]} : vector<8x384xf32> to vector<8x128xf32>
    %227 = vector.extract_strided_slice %213 {offsets = [0, 256], sizes = [8, 128], strides = [1, 1]} : vector<8x384xf32> to vector<8x128xf32>
    %228 = arith.mulf %224, %227 : vector<8x128xf32>
    %229 = arith.addf %226, %228 : vector<8x128xf32>
    %230 = math.tanh %229 : vector<8x128xf32>
    %cst_63 = arith.constant 1.000000e+00 : f32
    %231 = vector.broadcast %cst_63 : f32 to vector<8x128xf32>
    %232 = arith.subf %231, %225 : vector<8x128xf32>
    %233 = arith.mulf %232, %230 : vector<8x128xf32>
    %234 = arith.mulf %225, %207 : vector<8x128xf32>
    %235 = arith.addf %233, %234 : vector<8x128xf32>
    %c8_i32_64 = arith.constant 8 : i32
    %c8_i32_65 = arith.constant 8 : i32
    %236 = arith.muli %c8_i32_64, %c8_i32_65 : i32
    %237 = tpu.assume_multiple %236, 8 : i32
    %238 = arith.index_cast %237 : i32 to index
    %c0_66 = arith.constant 0 : index
    %239 = vector.load %arg5[%238, %c0_66] : memref<128x384xf32, #tpu.memory_space<vmem>>, vector<8x384xf32>
    %cst_67 = arith.constant dense<0.000000e+00> : vector<8x384xf32>
    %240 = tpu.matmul %235, %1, %cst_67 {dimension_numbers = #tpu.dot_dimension_numbers<[1], [0], [0], [1], [0, 0, 1, 1], [], []>} : vector<8x128xf32>, vector<128x384xf32>, vector<8x384xf32> -> vector<8x384xf32>
    %241 = arith.addf %240, %5 : vector<8x384xf32>
    %242 = vector.extract_strided_slice %239 {offsets = [0, 0], sizes = [8, 256], strides = [1, 1]} : vector<8x384xf32> to vector<8x256xf32>
    %243 = vector.extract_strided_slice %241 {offsets = [0, 0], sizes = [8, 256], strides = [1, 1]} : vector<8x384xf32> to vector<8x256xf32>
    %244 = arith.addf %242, %243 : vector<8x256xf32>
    %cst_68 = arith.constant 5.000000e-01 : f32
    %245 = vector.broadcast %cst_68 : f32 to vector<8x256xf32>
    %246 = arith.mulf %245, %244 : vector<8x256xf32>
    %247 = math.tanh %246 : vector<8x256xf32>
    %cst_69 = arith.constant 1.000000e+00 : f32
    %248 = vector.broadcast %cst_69 : f32 to vector<8x256xf32>
    %249 = arith.addf %247, %248 : vector<8x256xf32>
    %cst_70 = arith.constant 5.000000e-01 : f32
    %250 = vector.broadcast %cst_70 : f32 to vector<8x256xf32>
    %251 = arith.mulf %250, %249 : vector<8x256xf32>
    %252 = vector.extract_strided_slice %251 {offsets = [0, 0], sizes = [8, 128], strides = [1, 1]} : vector<8x256xf32> to vector<8x128xf32>
    %253 = vector.extract_strided_slice %251 {offsets = [0, 128], sizes = [8, 128], strides = [1, 1]} : vector<8x256xf32> to vector<8x128xf32>
    %254 = vector.extract_strided_slice %239 {offsets = [0, 256], sizes = [8, 128], strides = [1, 1]} : vector<8x384xf32> to vector<8x128xf32>
    %255 = vector.extract_strided_slice %241 {offsets = [0, 256], sizes = [8, 128], strides = [1, 1]} : vector<8x384xf32> to vector<8x128xf32>
    %256 = arith.mulf %252, %255 : vector<8x128xf32>
    %257 = arith.addf %254, %256 : vector<8x128xf32>
    %258 = math.tanh %257 : vector<8x128xf32>
    %cst_71 = arith.constant 1.000000e+00 : f32
    %259 = vector.broadcast %cst_71 : f32 to vector<8x128xf32>
    %260 = arith.subf %259, %253 : vector<8x128xf32>
    %261 = arith.mulf %260, %258 : vector<8x128xf32>
    %262 = arith.mulf %253, %235 : vector<8x128xf32>
    %263 = arith.addf %261, %262 : vector<8x128xf32>
    %c9_i32 = arith.constant 9 : i32
    %c8_i32_72 = arith.constant 8 : i32
    %264 = arith.muli %c9_i32, %c8_i32_72 : i32
    %265 = tpu.assume_multiple %264, 8 : i32
    %266 = arith.index_cast %265 : i32 to index
    %c0_73 = arith.constant 0 : index
    %267 = vector.load %arg5[%266, %c0_73] : memref<128x384xf32, #tpu.memory_space<vmem>>, vector<8x384xf32>
    %cst_74 = arith.constant dense<0.000000e+00> : vector<8x384xf32>
    %268 = tpu.matmul %263, %1, %cst_74 {dimension_numbers = #tpu.dot_dimension_numbers<[1], [0], [0], [1], [0, 0, 1, 1], [], []>} : vector<8x128xf32>, vector<128x384xf32>, vector<8x384xf32> -> vector<8x384xf32>
    %269 = arith.addf %268, %5 : vector<8x384xf32>
    %270 = vector.extract_strided_slice %267 {offsets = [0, 0], sizes = [8, 256], strides = [1, 1]} : vector<8x384xf32> to vector<8x256xf32>
    %271 = vector.extract_strided_slice %269 {offsets = [0, 0], sizes = [8, 256], strides = [1, 1]} : vector<8x384xf32> to vector<8x256xf32>
    %272 = arith.addf %270, %271 : vector<8x256xf32>
    %cst_75 = arith.constant 5.000000e-01 : f32
    %273 = vector.broadcast %cst_75 : f32 to vector<8x256xf32>
    %274 = arith.mulf %273, %272 : vector<8x256xf32>
    %275 = math.tanh %274 : vector<8x256xf32>
    %cst_76 = arith.constant 1.000000e+00 : f32
    %276 = vector.broadcast %cst_76 : f32 to vector<8x256xf32>
    %277 = arith.addf %275, %276 : vector<8x256xf32>
    %cst_77 = arith.constant 5.000000e-01 : f32
    %278 = vector.broadcast %cst_77 : f32 to vector<8x256xf32>
    %279 = arith.mulf %278, %277 : vector<8x256xf32>
    %280 = vector.extract_strided_slice %279 {offsets = [0, 0], sizes = [8, 128], strides = [1, 1]} : vector<8x256xf32> to vector<8x128xf32>
    %281 = vector.extract_strided_slice %279 {offsets = [0, 128], sizes = [8, 128], strides = [1, 1]} : vector<8x256xf32> to vector<8x128xf32>
    %282 = vector.extract_strided_slice %267 {offsets = [0, 256], sizes = [8, 128], strides = [1, 1]} : vector<8x384xf32> to vector<8x128xf32>
    %283 = vector.extract_strided_slice %269 {offsets = [0, 256], sizes = [8, 128], strides = [1, 1]} : vector<8x384xf32> to vector<8x128xf32>
    %284 = arith.mulf %280, %283 : vector<8x128xf32>
    %285 = arith.addf %282, %284 : vector<8x128xf32>
    %286 = math.tanh %285 : vector<8x128xf32>
    %cst_78 = arith.constant 1.000000e+00 : f32
    %287 = vector.broadcast %cst_78 : f32 to vector<8x128xf32>
    %288 = arith.subf %287, %281 : vector<8x128xf32>
    %289 = arith.mulf %288, %286 : vector<8x128xf32>
    %290 = arith.mulf %281, %263 : vector<8x128xf32>
    %291 = arith.addf %289, %290 : vector<8x128xf32>
    %c10_i32 = arith.constant 10 : i32
    %c8_i32_79 = arith.constant 8 : i32
    %292 = arith.muli %c10_i32, %c8_i32_79 : i32
    %293 = tpu.assume_multiple %292, 8 : i32
    %294 = arith.index_cast %293 : i32 to index
    %c0_80 = arith.constant 0 : index
    %295 = vector.load %arg5[%294, %c0_80] : memref<128x384xf32, #tpu.memory_space<vmem>>, vector<8x384xf32>
    %cst_81 = arith.constant dense<0.000000e+00> : vector<8x384xf32>
    %296 = tpu.matmul %291, %1, %cst_81 {dimension_numbers = #tpu.dot_dimension_numbers<[1], [0], [0], [1], [0, 0, 1, 1], [], []>} : vector<8x128xf32>, vector<128x384xf32>, vector<8x384xf32> -> vector<8x384xf32>
    %297 = arith.addf %296, %5 : vector<8x384xf32>
    %298 = vector.extract_strided_slice %295 {offsets = [0, 0], sizes = [8, 256], strides = [1, 1]} : vector<8x384xf32> to vector<8x256xf32>
    %299 = vector.extract_strided_slice %297 {offsets = [0, 0], sizes = [8, 256], strides = [1, 1]} : vector<8x384xf32> to vector<8x256xf32>
    %300 = arith.addf %298, %299 : vector<8x256xf32>
    %cst_82 = arith.constant 5.000000e-01 : f32
    %301 = vector.broadcast %cst_82 : f32 to vector<8x256xf32>
    %302 = arith.mulf %301, %300 : vector<8x256xf32>
    %303 = math.tanh %302 : vector<8x256xf32>
    %cst_83 = arith.constant 1.000000e+00 : f32
    %304 = vector.broadcast %cst_83 : f32 to vector<8x256xf32>
    %305 = arith.addf %303, %304 : vector<8x256xf32>
    %cst_84 = arith.constant 5.000000e-01 : f32
    %306 = vector.broadcast %cst_84 : f32 to vector<8x256xf32>
    %307 = arith.mulf %306, %305 : vector<8x256xf32>
    %308 = vector.extract_strided_slice %307 {offsets = [0, 0], sizes = [8, 128], strides = [1, 1]} : vector<8x256xf32> to vector<8x128xf32>
    %309 = vector.extract_strided_slice %307 {offsets = [0, 128], sizes = [8, 128], strides = [1, 1]} : vector<8x256xf32> to vector<8x128xf32>
    %310 = vector.extract_strided_slice %295 {offsets = [0, 256], sizes = [8, 128], strides = [1, 1]} : vector<8x384xf32> to vector<8x128xf32>
    %311 = vector.extract_strided_slice %297 {offsets = [0, 256], sizes = [8, 128], strides = [1, 1]} : vector<8x384xf32> to vector<8x128xf32>
    %312 = arith.mulf %308, %311 : vector<8x128xf32>
    %313 = arith.addf %310, %312 : vector<8x128xf32>
    %314 = math.tanh %313 : vector<8x128xf32>
    %cst_85 = arith.constant 1.000000e+00 : f32
    %315 = vector.broadcast %cst_85 : f32 to vector<8x128xf32>
    %316 = arith.subf %315, %309 : vector<8x128xf32>
    %317 = arith.mulf %316, %314 : vector<8x128xf32>
    %318 = arith.mulf %309, %291 : vector<8x128xf32>
    %319 = arith.addf %317, %318 : vector<8x128xf32>
    %c11_i32 = arith.constant 11 : i32
    %c8_i32_86 = arith.constant 8 : i32
    %320 = arith.muli %c11_i32, %c8_i32_86 : i32
    %321 = tpu.assume_multiple %320, 8 : i32
    %322 = arith.index_cast %321 : i32 to index
    %c0_87 = arith.constant 0 : index
    %323 = vector.load %arg5[%322, %c0_87] : memref<128x384xf32, #tpu.memory_space<vmem>>, vector<8x384xf32>
    %cst_88 = arith.constant dense<0.000000e+00> : vector<8x384xf32>
    %324 = tpu.matmul %319, %1, %cst_88 {dimension_numbers = #tpu.dot_dimension_numbers<[1], [0], [0], [1], [0, 0, 1, 1], [], []>} : vector<8x128xf32>, vector<128x384xf32>, vector<8x384xf32> -> vector<8x384xf32>
    %325 = arith.addf %324, %5 : vector<8x384xf32>
    %326 = vector.extract_strided_slice %323 {offsets = [0, 0], sizes = [8, 256], strides = [1, 1]} : vector<8x384xf32> to vector<8x256xf32>
    %327 = vector.extract_strided_slice %325 {offsets = [0, 0], sizes = [8, 256], strides = [1, 1]} : vector<8x384xf32> to vector<8x256xf32>
    %328 = arith.addf %326, %327 : vector<8x256xf32>
    %cst_89 = arith.constant 5.000000e-01 : f32
    %329 = vector.broadcast %cst_89 : f32 to vector<8x256xf32>
    %330 = arith.mulf %329, %328 : vector<8x256xf32>
    %331 = math.tanh %330 : vector<8x256xf32>
    %cst_90 = arith.constant 1.000000e+00 : f32
    %332 = vector.broadcast %cst_90 : f32 to vector<8x256xf32>
    %333 = arith.addf %331, %332 : vector<8x256xf32>
    %cst_91 = arith.constant 5.000000e-01 : f32
    %334 = vector.broadcast %cst_91 : f32 to vector<8x256xf32>
    %335 = arith.mulf %334, %333 : vector<8x256xf32>
    %336 = vector.extract_strided_slice %335 {offsets = [0, 0], sizes = [8, 128], strides = [1, 1]} : vector<8x256xf32> to vector<8x128xf32>
    %337 = vector.extract_strided_slice %335 {offsets = [0, 128], sizes = [8, 128], strides = [1, 1]} : vector<8x256xf32> to vector<8x128xf32>
    %338 = vector.extract_strided_slice %323 {offsets = [0, 256], sizes = [8, 128], strides = [1, 1]} : vector<8x384xf32> to vector<8x128xf32>
    %339 = vector.extract_strided_slice %325 {offsets = [0, 256], sizes = [8, 128], strides = [1, 1]} : vector<8x384xf32> to vector<8x128xf32>
    %340 = arith.mulf %336, %339 : vector<8x128xf32>
    %341 = arith.addf %338, %340 : vector<8x128xf32>
    %342 = math.tanh %341 : vector<8x128xf32>
    %cst_92 = arith.constant 1.000000e+00 : f32
    %343 = vector.broadcast %cst_92 : f32 to vector<8x128xf32>
    %344 = arith.subf %343, %337 : vector<8x128xf32>
    %345 = arith.mulf %344, %342 : vector<8x128xf32>
    %346 = arith.mulf %337, %319 : vector<8x128xf32>
    %347 = arith.addf %345, %346 : vector<8x128xf32>
    %c12_i32 = arith.constant 12 : i32
    %c8_i32_93 = arith.constant 8 : i32
    %348 = arith.muli %c12_i32, %c8_i32_93 : i32
    %349 = tpu.assume_multiple %348, 8 : i32
    %350 = arith.index_cast %349 : i32 to index
    %c0_94 = arith.constant 0 : index
    %351 = vector.load %arg5[%350, %c0_94] : memref<128x384xf32, #tpu.memory_space<vmem>>, vector<8x384xf32>
    %cst_95 = arith.constant dense<0.000000e+00> : vector<8x384xf32>
    %352 = tpu.matmul %347, %1, %cst_95 {dimension_numbers = #tpu.dot_dimension_numbers<[1], [0], [0], [1], [0, 0, 1, 1], [], []>} : vector<8x128xf32>, vector<128x384xf32>, vector<8x384xf32> -> vector<8x384xf32>
    %353 = arith.addf %352, %5 : vector<8x384xf32>
    %354 = vector.extract_strided_slice %351 {offsets = [0, 0], sizes = [8, 256], strides = [1, 1]} : vector<8x384xf32> to vector<8x256xf32>
    %355 = vector.extract_strided_slice %353 {offsets = [0, 0], sizes = [8, 256], strides = [1, 1]} : vector<8x384xf32> to vector<8x256xf32>
    %356 = arith.addf %354, %355 : vector<8x256xf32>
    %cst_96 = arith.constant 5.000000e-01 : f32
    %357 = vector.broadcast %cst_96 : f32 to vector<8x256xf32>
    %358 = arith.mulf %357, %356 : vector<8x256xf32>
    %359 = math.tanh %358 : vector<8x256xf32>
    %cst_97 = arith.constant 1.000000e+00 : f32
    %360 = vector.broadcast %cst_97 : f32 to vector<8x256xf32>
    %361 = arith.addf %359, %360 : vector<8x256xf32>
    %cst_98 = arith.constant 5.000000e-01 : f32
    %362 = vector.broadcast %cst_98 : f32 to vector<8x256xf32>
    %363 = arith.mulf %362, %361 : vector<8x256xf32>
    %364 = vector.extract_strided_slice %363 {offsets = [0, 0], sizes = [8, 128], strides = [1, 1]} : vector<8x256xf32> to vector<8x128xf32>
    %365 = vector.extract_strided_slice %363 {offsets = [0, 128], sizes = [8, 128], strides = [1, 1]} : vector<8x256xf32> to vector<8x128xf32>
    %366 = vector.extract_strided_slice %351 {offsets = [0, 256], sizes = [8, 128], strides = [1, 1]} : vector<8x384xf32> to vector<8x128xf32>
    %367 = vector.extract_strided_slice %353 {offsets = [0, 256], sizes = [8, 128], strides = [1, 1]} : vector<8x384xf32> to vector<8x128xf32>
    %368 = arith.mulf %364, %367 : vector<8x128xf32>
    %369 = arith.addf %366, %368 : vector<8x128xf32>
    %370 = math.tanh %369 : vector<8x128xf32>
    %cst_99 = arith.constant 1.000000e+00 : f32
    %371 = vector.broadcast %cst_99 : f32 to vector<8x128xf32>
    %372 = arith.subf %371, %365 : vector<8x128xf32>
    %373 = arith.mulf %372, %370 : vector<8x128xf32>
    %374 = arith.mulf %365, %347 : vector<8x128xf32>
    %375 = arith.addf %373, %374 : vector<8x128xf32>
    %c13_i32 = arith.constant 13 : i32
    %c8_i32_100 = arith.constant 8 : i32
    %376 = arith.muli %c13_i32, %c8_i32_100 : i32
    %377 = tpu.assume_multiple %376, 8 : i32
    %378 = arith.index_cast %377 : i32 to index
    %c0_101 = arith.constant 0 : index
    %379 = vector.load %arg5[%378, %c0_101] : memref<128x384xf32, #tpu.memory_space<vmem>>, vector<8x384xf32>
    %cst_102 = arith.constant dense<0.000000e+00> : vector<8x384xf32>
    %380 = tpu.matmul %375, %1, %cst_102 {dimension_numbers = #tpu.dot_dimension_numbers<[1], [0], [0], [1], [0, 0, 1, 1], [], []>} : vector<8x128xf32>, vector<128x384xf32>, vector<8x384xf32> -> vector<8x384xf32>
    %381 = arith.addf %380, %5 : vector<8x384xf32>
    %382 = vector.extract_strided_slice %379 {offsets = [0, 0], sizes = [8, 256], strides = [1, 1]} : vector<8x384xf32> to vector<8x256xf32>
    %383 = vector.extract_strided_slice %381 {offsets = [0, 0], sizes = [8, 256], strides = [1, 1]} : vector<8x384xf32> to vector<8x256xf32>
    %384 = arith.addf %382, %383 : vector<8x256xf32>
    %cst_103 = arith.constant 5.000000e-01 : f32
    %385 = vector.broadcast %cst_103 : f32 to vector<8x256xf32>
    %386 = arith.mulf %385, %384 : vector<8x256xf32>
    %387 = math.tanh %386 : vector<8x256xf32>
    %cst_104 = arith.constant 1.000000e+00 : f32
    %388 = vector.broadcast %cst_104 : f32 to vector<8x256xf32>
    %389 = arith.addf %387, %388 : vector<8x256xf32>
    %cst_105 = arith.constant 5.000000e-01 : f32
    %390 = vector.broadcast %cst_105 : f32 to vector<8x256xf32>
    %391 = arith.mulf %390, %389 : vector<8x256xf32>
    %392 = vector.extract_strided_slice %391 {offsets = [0, 0], sizes = [8, 128], strides = [1, 1]} : vector<8x256xf32> to vector<8x128xf32>
    %393 = vector.extract_strided_slice %391 {offsets = [0, 128], sizes = [8, 128], strides = [1, 1]} : vector<8x256xf32> to vector<8x128xf32>
    %394 = vector.extract_strided_slice %379 {offsets = [0, 256], sizes = [8, 128], strides = [1, 1]} : vector<8x384xf32> to vector<8x128xf32>
    %395 = vector.extract_strided_slice %381 {offsets = [0, 256], sizes = [8, 128], strides = [1, 1]} : vector<8x384xf32> to vector<8x128xf32>
    %396 = arith.mulf %392, %395 : vector<8x128xf32>
    %397 = arith.addf %394, %396 : vector<8x128xf32>
    %398 = math.tanh %397 : vector<8x128xf32>
    %cst_106 = arith.constant 1.000000e+00 : f32
    %399 = vector.broadcast %cst_106 : f32 to vector<8x128xf32>
    %400 = arith.subf %399, %393 : vector<8x128xf32>
    %401 = arith.mulf %400, %398 : vector<8x128xf32>
    %402 = arith.mulf %393, %375 : vector<8x128xf32>
    %403 = arith.addf %401, %402 : vector<8x128xf32>
    %c14_i32 = arith.constant 14 : i32
    %c8_i32_107 = arith.constant 8 : i32
    %404 = arith.muli %c14_i32, %c8_i32_107 : i32
    %405 = tpu.assume_multiple %404, 8 : i32
    %406 = arith.index_cast %405 : i32 to index
    %c0_108 = arith.constant 0 : index
    %407 = vector.load %arg5[%406, %c0_108] : memref<128x384xf32, #tpu.memory_space<vmem>>, vector<8x384xf32>
    %cst_109 = arith.constant dense<0.000000e+00> : vector<8x384xf32>
    %408 = tpu.matmul %403, %1, %cst_109 {dimension_numbers = #tpu.dot_dimension_numbers<[1], [0], [0], [1], [0, 0, 1, 1], [], []>} : vector<8x128xf32>, vector<128x384xf32>, vector<8x384xf32> -> vector<8x384xf32>
    %409 = arith.addf %408, %5 : vector<8x384xf32>
    %410 = vector.extract_strided_slice %407 {offsets = [0, 0], sizes = [8, 256], strides = [1, 1]} : vector<8x384xf32> to vector<8x256xf32>
    %411 = vector.extract_strided_slice %409 {offsets = [0, 0], sizes = [8, 256], strides = [1, 1]} : vector<8x384xf32> to vector<8x256xf32>
    %412 = arith.addf %410, %411 : vector<8x256xf32>
    %cst_110 = arith.constant 5.000000e-01 : f32
    %413 = vector.broadcast %cst_110 : f32 to vector<8x256xf32>
    %414 = arith.mulf %413, %412 : vector<8x256xf32>
    %415 = math.tanh %414 : vector<8x256xf32>
    %cst_111 = arith.constant 1.000000e+00 : f32
    %416 = vector.broadcast %cst_111 : f32 to vector<8x256xf32>
    %417 = arith.addf %415, %416 : vector<8x256xf32>
    %cst_112 = arith.constant 5.000000e-01 : f32
    %418 = vector.broadcast %cst_112 : f32 to vector<8x256xf32>
    %419 = arith.mulf %418, %417 : vector<8x256xf32>
    %420 = vector.extract_strided_slice %419 {offsets = [0, 0], sizes = [8, 128], strides = [1, 1]} : vector<8x256xf32> to vector<8x128xf32>
    %421 = vector.extract_strided_slice %419 {offsets = [0, 128], sizes = [8, 128], strides = [1, 1]} : vector<8x256xf32> to vector<8x128xf32>
    %422 = vector.extract_strided_slice %407 {offsets = [0, 256], sizes = [8, 128], strides = [1, 1]} : vector<8x384xf32> to vector<8x128xf32>
    %423 = vector.extract_strided_slice %409 {offsets = [0, 256], sizes = [8, 128], strides = [1, 1]} : vector<8x384xf32> to vector<8x128xf32>
    %424 = arith.mulf %420, %423 : vector<8x128xf32>
    %425 = arith.addf %422, %424 : vector<8x128xf32>
    %426 = math.tanh %425 : vector<8x128xf32>
    %cst_113 = arith.constant 1.000000e+00 : f32
    %427 = vector.broadcast %cst_113 : f32 to vector<8x128xf32>
    %428 = arith.subf %427, %421 : vector<8x128xf32>
    %429 = arith.mulf %428, %426 : vector<8x128xf32>
    %430 = arith.mulf %421, %403 : vector<8x128xf32>
    %431 = arith.addf %429, %430 : vector<8x128xf32>
    %c15_i32 = arith.constant 15 : i32
    %c8_i32_114 = arith.constant 8 : i32
    %432 = arith.muli %c15_i32, %c8_i32_114 : i32
    %433 = tpu.assume_multiple %432, 8 : i32
    %434 = arith.index_cast %433 : i32 to index
    %c0_115 = arith.constant 0 : index
    %435 = vector.load %arg5[%434, %c0_115] : memref<128x384xf32, #tpu.memory_space<vmem>>, vector<8x384xf32>
    %cst_116 = arith.constant dense<0.000000e+00> : vector<8x384xf32>
    %436 = tpu.matmul %431, %1, %cst_116 {dimension_numbers = #tpu.dot_dimension_numbers<[1], [0], [0], [1], [0, 0, 1, 1], [], []>} : vector<8x128xf32>, vector<128x384xf32>, vector<8x384xf32> -> vector<8x384xf32>
    %437 = arith.addf %436, %5 : vector<8x384xf32>
    %438 = vector.extract_strided_slice %435 {offsets = [0, 0], sizes = [8, 256], strides = [1, 1]} : vector<8x384xf32> to vector<8x256xf32>
    %439 = vector.extract_strided_slice %437 {offsets = [0, 0], sizes = [8, 256], strides = [1, 1]} : vector<8x384xf32> to vector<8x256xf32>
    %440 = arith.addf %438, %439 : vector<8x256xf32>
    %cst_117 = arith.constant 5.000000e-01 : f32
    %441 = vector.broadcast %cst_117 : f32 to vector<8x256xf32>
    %442 = arith.mulf %441, %440 : vector<8x256xf32>
    %443 = math.tanh %442 : vector<8x256xf32>
    %cst_118 = arith.constant 1.000000e+00 : f32
    %444 = vector.broadcast %cst_118 : f32 to vector<8x256xf32>
    %445 = arith.addf %443, %444 : vector<8x256xf32>
    %cst_119 = arith.constant 5.000000e-01 : f32
    %446 = vector.broadcast %cst_119 : f32 to vector<8x256xf32>
    %447 = arith.mulf %446, %445 : vector<8x256xf32>
    %448 = vector.extract_strided_slice %447 {offsets = [0, 0], sizes = [8, 128], strides = [1, 1]} : vector<8x256xf32> to vector<8x128xf32>
    %449 = vector.extract_strided_slice %447 {offsets = [0, 128], sizes = [8, 128], strides = [1, 1]} : vector<8x256xf32> to vector<8x128xf32>
    %450 = vector.extract_strided_slice %435 {offsets = [0, 256], sizes = [8, 128], strides = [1, 1]} : vector<8x384xf32> to vector<8x128xf32>
    %451 = vector.extract_strided_slice %437 {offsets = [0, 256], sizes = [8, 128], strides = [1, 1]} : vector<8x384xf32> to vector<8x128xf32>
    %452 = arith.mulf %448, %451 : vector<8x128xf32>
    %453 = arith.addf %450, %452 : vector<8x128xf32>
    %454 = math.tanh %453 : vector<8x128xf32>
    %cst_120 = arith.constant 1.000000e+00 : f32
    %455 = vector.broadcast %cst_120 : f32 to vector<8x128xf32>
    %456 = arith.subf %455, %449 : vector<8x128xf32>
    %457 = arith.mulf %456, %454 : vector<8x128xf32>
    %458 = arith.mulf %449, %431 : vector<8x128xf32>
    %459 = arith.addf %457, %458 : vector<8x128xf32>
    %c16_i32 = arith.constant 16 : i32
    tpu.wait_dma2 semaphore(%arg7 : memref<!tpu.dma_semaphore, #tpu.memory_space<semaphore_mem>>) src(%arg2 : memref<408x256xf32, #tpu.memory_space<any>>) dst(%arg6 : memref<408x256xf32, #tpu.memory_space<vmem>>)
    %c0_121 = arith.constant 0 : index
    %c0_122 = arith.constant 0 : index
    %460 = vector.load %arg6[%c0_121, %c0_122] : memref<408x256xf32, #tpu.memory_space<vmem>>, vector<128x128xf32>
    %c128 = arith.constant 128 : index
    %c0_123 = arith.constant 0 : index
    %461 = vector.load %arg6[%c128, %c0_123] : memref<408x256xf32, #tpu.memory_space<vmem>>, vector<1x128xf32>
    %c136_124 = arith.constant 136 : index
    %c0_125 = arith.constant 0 : index
    %462 = vector.load %arg6[%c136_124, %c0_125] : memref<408x256xf32, #tpu.memory_space<vmem>>, vector<128x128xf32>
    %c264 = arith.constant 264 : index
    %c0_126 = arith.constant 0 : index
    %463 = vector.load %arg6[%c264, %c0_126] : memref<408x256xf32, #tpu.memory_space<vmem>>, vector<1x128xf32>
    %c272 = arith.constant 272 : index
    %c0_127 = arith.constant 0 : index
    %464 = vector.load %arg6[%c272, %c0_127] : memref<408x256xf32, #tpu.memory_space<vmem>>, vector<128x256xf32>
    %c400 = arith.constant 400 : index
    %c0_128 = arith.constant 0 : index
    %465 = vector.load %arg6[%c400, %c0_128] : memref<408x256xf32, #tpu.memory_space<vmem>>, vector<1x256xf32>
    %cst_129 = arith.constant dense<0.000000e+00> : vector<8x128xf32>
    %466 = tpu.matmul %459, %460, %cst_129 {dimension_numbers = #tpu.dot_dimension_numbers<[1], [0], [0], [1], [0, 0, 1, 1], [], []>} : vector<8x128xf32>, vector<128x128xf32>, vector<8x128xf32> -> vector<8x128xf32>
    %467 = vector.broadcast %461 : vector<1x128xf32> to vector<8x128xf32>
    %468 = arith.addf %466, %467 : vector<8x128xf32>
    %469 = math.tanh %468 : vector<8x128xf32>
    %cst_130 = arith.constant dense<0.000000e+00> : vector<8x128xf32>
    %470 = tpu.matmul %469, %462, %cst_130 {dimension_numbers = #tpu.dot_dimension_numbers<[1], [0], [0], [1], [0, 0, 1, 1], [], []>} : vector<8x128xf32>, vector<128x128xf32>, vector<8x128xf32> -> vector<8x128xf32>
    %471 = vector.broadcast %463 : vector<1x128xf32> to vector<8x128xf32>
    %472 = arith.addf %470, %471 : vector<8x128xf32>
    %473 = math.tanh %472 : vector<8x128xf32>
    %cst_131 = arith.constant dense<0.000000e+00> : vector<8x256xf32>
    %474 = tpu.matmul %473, %464, %cst_131 {dimension_numbers = #tpu.dot_dimension_numbers<[1], [0], [0], [1], [0, 0, 1, 1], [], []>} : vector<8x128xf32>, vector<128x256xf32>, vector<8x256xf32> -> vector<8x256xf32>
    %475 = vector.broadcast %465 : vector<1x256xf32> to vector<8x256xf32>
    %476 = arith.addf %474, %475 : vector<8x256xf32>
    %477 = vector.extract_strided_slice %476 {offsets = [0, 0], sizes = [8, 128], strides = [1, 1]} : vector<8x256xf32> to vector<8x128xf32>
    %478 = vector.extract_strided_slice %476 {offsets = [0, 128], sizes = [8, 128], strides = [1, 1]} : vector<8x256xf32> to vector<8x128xf32>
    %c0_132 = arith.constant 0 : index
    %c0_133 = arith.constant 0 : index
    %479 = vector.load %arg3[%c0_132, %c0_133] : memref<8x128xf32, #tpu.memory_space<vmem>>, vector<8x128xf32>
    %480 = arith.mulf %477, %479 : vector<8x128xf32>
    %481 = arith.addf %480, %478 : vector<8x128xf32>
    %c0_134 = arith.constant 0 : index
    %c0_135 = arith.constant 0 : index
    %482 = vector.load %arg4[%c0_134, %c0_135] : memref<8x384xf32, #tpu.memory_space<vmem>>, vector<8x128xf32>
    tpu.vector_store %arg4[%c0_134, %c0_135], %481 {strides = array<i32>} : memref<8x384xf32, #tpu.memory_space<vmem>>, vector<8x128xf32>,
    %c0_136 = arith.constant 0 : index
    %c128_137 = arith.constant 128 : index
    %483 = vector.load %arg4[%c0_136, %c128_137] : memref<8x384xf32, #tpu.memory_space<vmem>>, vector<8x128xf32>
    tpu.vector_store %arg4[%c0_136, %c128_137], %477 {strides = array<i32>} : memref<8x384xf32, #tpu.memory_space<vmem>>, vector<8x128xf32>,
    %c0_138 = arith.constant 0 : index
    %c256 = arith.constant 256 : index
    %484 = vector.load %arg4[%c0_138, %c256] : memref<8x384xf32, #tpu.memory_space<vmem>>, vector<8x128xf32>
    tpu.vector_store %arg4[%c0_138, %c256], %478 {strides = array<i32>} : memref<8x384xf32, #tpu.memory_space<vmem>>, vector<8x128xf32>,
    return
  }
}

</mosaic_0001>

<llo_original>
// kernel: model_dlow_forward.1
$region0: #{model_dlow_forward.1}
  #allocation0 [shape = 'u32[]', space=smem, size = 0x4, offset = 0x4, fixed_abs, tag = 'smem constant byte address 0x4 - core index']
  #allocation1 [shape = 'u32[72,128]{1,0:T(1,128)}', space=vmem, size = 0x9000, scoped, tag = 'internal scratch']
  #allocation2 [shape = 'f32[128,384]{1,0:T(8,128)}', space=vmem, size = 0x30000, scoped, tag = 'scratch operand']
  #allocation3 [shape = 'f32[408,256]{1,0:T(8,128)}', space=vmem, size = 0x66000, scoped, tag = 'scratch operand']
  #allocation4 [shape = 's32[1]{0}', space=sflag, size = 0x4, scoped, tag = 'scratch operand']
  #allocation7 [shape = 's32[]', space=sflag, size = 0x4, offset = 0, fixed_abs, tag = 'sflag constant byte address 0x0 - dummy sync flag']
  #allocation8 [shape = 's32[]', space=sflag, size = 0x4, offset = 0, fixed_abs, tag = 'sflag constant byte address 0x0 - dummy sync flag']
  #allocation9 [shape = 'u32[]', space=smem, size = 0x4, offset = 0x44, fixed_abs, tag = 'smem constant byte address 0x44 - assertion arg 0']
  #allocation10 [shape = 'u32[]', space=smem, size = 0x4, offset = 0x48, fixed_abs, tag = 'smem constant byte address 0x48 - assertion arg 1']
  %s0 = inlined_call_operand.vmem [shape: f32[128,8], index: 0, kind: input, shape index: {}]
  %s1 = inlined_call_operand.hbm [shape: f32[152,384], index: 1, kind: input, shape index: {}]
  %s2 = inlined_call_operand.hbm [shape: f32[408,256], index: 2, kind: input, shape index: {}]
  %s3 = inlined_call_operand.vmem [shape: f32[8,128], index: 3, kind: input, shape index: {}]
  %s4 = inlined_call_operand.vmem [shape: f32[8,384], index: 4, kind: output, shape index: {}]
  %s5 = sld [smem:[#allocation0]]
  $region30: #{model_dlow_forward.1} parent=0
    _
  %s7 = ssub.s32 1, %s5
  %s8 = scalar_select 0, %s7, %s5
  $region1: #{model_dlow_forward.1} parent=0
    #allocation5 [shape = 'u8[233472]{0}', space=vmem, size = 0x39000, scoped, tag = 'input window, operand 1, single buffered']
    #allocation6 [shape = 's32[1]{0}', space=sflag, size = 0x4, scoped, tag = 'scoped memory for model_dlow_forward.1']
    %9 = vsyncpa [#allocation6], 0
    // Predicated region
    $region2: #{model_dlow_forward.1} parent=1 // pred_check
      _
    $region3: #{model_dlow_forward.1} parent=1 // pred_check_branch
      %11 = sbr.rel (0) target = $region5
    $region4: #{model_dlow_forward.1} parent=1 // pred_region
      _
    $region5: #{model_dlow_forward.1} parent=1 // pred_fallthru
      _
    // Predicated region
    $region6: #{model_dlow_forward.1} parent=1 // pred_check
      _
    $region7: #{model_dlow_forward.1} parent=1 // pred_check_branch
      %13 = sbr.rel (0) target = $region9
    $region8: #{model_dlow_forward.1} parent=1 // pred_region
      %15 = vsyncadd [#allocation6], 0
      %s16 = sshll.u32 %s1, 4
      %s17 = int_to_ptr.hbm [resolvable:$true] %s16
      %s18 = sshll.u32 [#allocation5], 4
      %s19 = int_to_ptr.vmem [resolvable:$true] %s18
      %24 = dma.hbm_to_vmem [thread:$0]  %s17, 7296, %s19, [#allocation6], 384, 384, 24
    $region9: #{model_dlow_forward.1} parent=1 // pred_fallthru
      _
    // Predicated region
    $region10: #{model_dlow_forward.1} parent=1 // pred_check
      _
    $region11: #{model_dlow_forward.1} parent=1 // pred_check_branch
      %26 = sbr.rel (0) target = $region13
    $region12: #{model_dlow_forward.1} parent=1 // pred_region
      _
    $region13: #{model_dlow_forward.1} parent=1 // pred_fallthru
      _
    // Predicated region
    $region14: #{model_dlow_forward.1} parent=1 // pred_check
      _
    $region15: #{model_dlow_forward.1} parent=1 // pred_check_branch
      %28 = sbr.rel (0) target = $region17
    $region16: #{model_dlow_forward.1} parent=1 // pred_region
      %30 = dma.done [#allocation6], 7296
    $region17: #{model_dlow_forward.1} parent=1 // pred_fallthru
      _
    // Predicated region
    $region18: #{model_dlow_forward.1} parent=1 // pred_check
      _
    $region19: #{model_dlow_forward.1} parent=1 // pred_check_branch
      %32 = sbr.rel target = $region21
    $region20: #{model_dlow_forward.1} parent=1 // pred_region
      %33 = sst [smem:[#allocation9]] [#allocation8]
      %34 = sst [smem:[#allocation10]] [#allocation7]
    $region21: #{model_dlow_forward.1} parent=1 // pred_fallthru
      _
    %36 = shalt.err (0)
    %s38 = sshll.u32 %s2, 4
    %s39 = int_to_ptr.hbm [resolvable:$true] %s38
    %s40 = sshll.u32 [#allocation3], 4
    %s41 = int_to_ptr.vmem [resolvable:$true] %s40
    %43 = dma.hbm_to_vmem [thread:$0]  %s39, 13056, %s41, [#allocation4]
    %v44 = vld [vmem:[#allocation5] sm:$0xff]
    %v45 = vld [vmem:[#allocation5 + $0x8] sm:$0xff]
    %v46 = vld [vmem:[#allocation5 + $0x10] sm:$0xff]
    %v47 = vld [vmem:[#allocation5 + $0x18] sm:$0xff]
    %v48 = vld [vmem:[#allocation5 + $0x20] sm:$0xff]
    %v49 = vld [vmem:[#allocation5 + $0x28] sm:$0xff]
    %v50 = vld [vmem:[#allocation5 + $0x30] sm:$0xff]
    %v51 = vld [vmem:[#allocation5 + $0x38] sm:$0xff]
    %v52 = vld [vmem:[#allocation5 + $0x40] sm:$0xff]
    %v53 = vld [vmem:[#allocation5 + $0x48] sm:$0xff]
    %v54 = vld [vmem:[#allocation5 + $0x50] sm:$0xff]
    %v55 = vld [vmem:[#allocation5 + $0x58] sm:$0xff]
    %v56 = vld [vmem:[#allocation5 + $0x60] sm:$0xff]
    %v57 = vld [vmem:[#allocation5 + $0x68] sm:$0xff]
    %v58 = vld [vmem:[#allocation5 + $0x70] sm:$0xff]
    %v59 = vld [vmem:[#allocation5 + $0x78] sm:$0xff]
    %v60 = vld [vmem:[#allocation5 + $0x80] sm:$0xff]
    %v61 = vld [vmem:[#allocation5 + $0x88] sm:$0xff]
    %v62 = vld [vmem:[#allocation5 + $0x90] sm:$0xff]
    %v63 = vld [vmem:[#allocation5 + $0x98] sm:$0xff]
    %v64 = vld [vmem:[#allocation5 + $0xa0] sm:$0xff]
    %v65 = vld [vmem:[#allocation5 + $0xa8] sm:$0xff]
    %v66 = vld [vmem:[#allocation5 + $0xb0] sm:$0xff]
    %v67 = vld [vmem:[#allocation5 + $0xb8] sm:$0xff]
    %v68 = vld [vmem:[#allocation5 + $0xc0] sm:$0xff]
    %v69 = vld [vmem:[#allocation5 + $0xc8] sm:$0xff]
    %v70 = vld [vmem:[#allocation5 + $0xd0] sm:$0xff]
    %v71 = vld [vmem:[#allocation5 + $0xd8] sm:$0xff]
    %v72 = vld [vmem:[#allocation5 + $0xe0] sm:$0xff]
    %v73 = vld [vmem:[#allocation5 + $0xe8] sm:$0xff]
    %v74 = vld [vmem:[#allocation5 + $0xf0] sm:$0xff]
    %v75 = vld [vmem:[#allocation5 + $0xf8] sm:$0xff]
    %v76 = vld [vmem:[#allocation5 + $0x100] sm:$0xff]
    %v77 = vld [vmem:[#allocation5 + $0x108] sm:$0xff]
    %v78 = vld [vmem:[#allocation5 + $0x110] sm:$0xff]
    %v79 = vld [vmem:[#allocation5 + $0x118] sm:$0xff]
    %v80 = vld [vmem:[#allocation5 + $0x120] sm:$0xff]
    %v81 = vld [vmem:[#allocation5 + $0x128] sm:$0xff]
    %v82 = vld [vmem:[#allocation5 + $0x130] sm:$0xff]
    %v83 = vld [vmem:[#allocation5 + $0x138] sm:$0xff]
    %v84 = vld [vmem:[#allocation5 + $0x140] sm:$0xff]
    %v85 = vld [vmem:[#allocation5 + $0x148] sm:$0xff]
    %v86 = vld [vmem:[#allocation5 + $0x150] sm:$0xff]
    %v87 = vld [vmem:[#allocation5 + $0x158] sm:$0xff]
    %v88 = vld [vmem:[#allocation5 + $0x160] sm:$0xff]
    %v89 = vld [vmem:[#allocation5 + $0x168] sm:$0xff]
    %v90 = vld [vmem:[#allocation5 + $0x170] sm:$0xff]
    %v91 = vld [vmem:[#allocation5 + $0x178] sm:$0xff]
    %v92 = vld [vmem:[#allocation5 + $0x180] sm:$0xff]
    %v93 = vld [vmem:[#allocation5 + $0x188] sm:$0xff]
    %v94 = vld [vmem:[#allocation5 + $0x190] sm:$0xff]
    %s95 = scalar_lea.vmem [#allocation5], 408
    %v96 = vld [vmem:[%s95] ss:$8 sm:$0x7]
    %s97 = scalar_lea.vmem [#allocation5], 432
    %v98 = vld [vmem:[%s97] ss:$8 sm:$0x7]
    %v100 = vperm.slane %v98, 0
    %v101 = vperm.slane %v98, 1
    %v102 = vperm.slane %v98, 2
    %v106 = vld [vmem:[%s0] sm:$0xff]
    %v107 = vld [vmem:[%s0 + $0x8] sm:$0xff]
    %v108 = vld [vmem:[%s0 + $0x10] sm:$0xff]
    %v109 = vld [vmem:[%s0 + $0x18] sm:$0xff]
    %v110 = vld [vmem:[%s0 + $0x20] sm:$0xff]
    %v111 = vld [vmem:[%s0 + $0x28] sm:$0xff]
    %v112 = vld [vmem:[%s0 + $0x30] sm:$0xff]
    %v113 = vld [vmem:[%s0 + $0x38] sm:$0xff]
    %v114 = vld [vmem:[%s0 + $0x40] sm:$0xff]
    %v115 = vld [vmem:[%s0 + $0x48] sm:$0xff]
    %v116 = vld [vmem:[%s0 + $0x50] sm:$0xff]
    %v117 = vld [vmem:[%s0 + $0x58] sm:$0xff]
    %v118 = vld [vmem:[%s0 + $0x60] sm:$0xff]
    %v119 = vld [vmem:[%s0 + $0x68] sm:$0xff]
    %v120 = vld [vmem:[%s0 + $0x70] sm:$0xff]
    %v121 = vld [vmem:[%s0 + $0x78] sm:$0xff]
    %v123 = vperm.slane %v96, 0
    %v124 = vperm.slane %v96, 1
    %v125 = vperm.slane %v96, 2
    %vm129 = vcmask 64512
    %v131 = vsel %vm129, %v106, 0
    %v134 = vsel %vm129, %v107, 0
    %v137 = vsel %vm129, %v108, 0
    %v140 = vsel %vm129, %v109, 0
    %v143 = vsel %vm129, %v110, 0
    %v146 = vsel %vm129, %v111, 0
    %v149 = vsel %vm129, %v112, 0
    %v152 = vsel %vm129, %v113, 0
    %v155 = vsel %vm129, %v114, 0
    %v158 = vsel %vm129, %v115, 0
    %v161 = vsel %vm129, %v116, 0
    %v164 = vsel %vm129, %v117, 0
    %v167 = vsel %vm129, %v118, 0
    %v170 = vsel %vm129, %v119, 0
    %v173 = vsel %vm129, %v120, 0
    %v176 = vsel %vm129, %v121, 0
    %178 = vmatpush.msra.mxu0 0.0
    %179 = vmatpush.msra.mxu0 0.0
    %180 = vmatpush.msra.mxu0 0.0
    %181 = vmatpush.msra.mxu0 0.0
    %182 = vmatpush.msra.mxu0 0.0
    %183 = vmatpush.msra.mxu0 0.0
    %184 = vmatpush.msra.mxu0 0.0
    %185 = vmatpush.msra.mxu0 0.0
    %186 = vmatpush.msra.mxu0 0.0
    %187 = vmatpush.msra.mxu0 0.0
    %188 = vmatpush.msra.mxu0 0.0
    %189 = vmatpush.msra.mxu0 0.0
    %190 = vmatpush.msra.mxu0 0.0
    %191 = vmatpush.msra.mxu0 0.0
    %192 = vmatpush.msra.mxu0 0.0
    %193 = vmatpush.msra.mxu0 %v44
    %194 = vmatmul.f32.gmra.mxu0 %v131
    %v195 = vpop.f32.mrf.mxu0
    %v196 = vadd.f32 %v123, %v195
    %197 = vmatmul.f32.gmra.mxu0 %v134
    %v198 = vpop.f32.mrf.mxu0
    %v199 = vadd.f32 %v123, %v198
    %200 = vmatmul.f32.gmra.mxu0 %v137
    %v201 = vpop.f32.mrf.mxu0
    %v202 = vadd.f32 %v123, %v201
    %203 = vmatmul.f32.gmra.mxu0 %v140
    %v204 = vpop.f32.mrf.mxu0
    %v205 = vadd.f32 %v123, %v204
    %206 = vmatmul.f32.gmra.mxu0 %v143
    %v207 = vpop.f32.mrf.mxu0
    %v208 = vadd.f32 %v123, %v207
    %209 = vmatmul.f32.gmra.mxu0 %v146
    %v210 = vpop.f32.mrf.mxu0
    %v211 = vadd.f32 %v123, %v210
    %212 = vmatmul.f32.gmra.mxu0 %v149
    %v213 = vpop.f32.mrf.mxu0
    %v214 = vadd.f32 %v123, %v213
    %215 = vmatmul.f32.gmra.mxu0 %v152
    %v216 = vpop.f32.mrf.mxu0
    %v217 = vadd.f32 %v123, %v216
    %218 = vmatmul.f32.gmra.mxu0 %v155
    %v219 = vpop.f32.mrf.mxu0
    %v220 = vadd.f32 %v123, %v219
    %221 = vmatmul.f32.gmra.mxu0 %v158
    %v222 = vpop.f32.mrf.mxu0
    %v223 = vadd.f32 %v123, %v222
    %224 = vmatmul.f32.gmra.mxu0 %v161
    %v225 = vpop.f32.mrf.mxu0
    %v226 = vadd.f32 %v123, %v225
    %227 = vmatmul.f32.gmra.mxu0 %v164
    %v228 = vpop.f32.mrf.mxu0
    %v229 = vadd.f32 %v123, %v228
    %230 = vmatmul.f32.gmra.mxu0 %v167
    %v231 = vpop.f32.mrf.mxu0
    %v232 = vadd.f32 %v123, %v231
    %233 = vmatmul.f32.gmra.mxu0 %v170
    %v234 = vpop.f32.mrf.mxu0
    %v235 = vadd.f32 %v123, %v234
    %236 = vmatmul.f32.gmra.mxu0 %v173
    %v237 = vpop.f32.mrf.mxu0
    %v238 = vadd.f32 %v123, %v237
    %239 = vmatmul.f32.gmra.mxu0 %v176
    %v240 = vpop.f32.mrf.mxu0
    %v241 = vadd.f32 %v123, %v240
    %242 = vdwg.mxu0
    %243 = vmatpush.msra.mxu0 0.0
    %244 = vmatpush.msra.mxu0 0.0
    %245 = vmatpush.msra.mxu0 0.0
    %246 = vmatpush.msra.mxu0 0.0
    %247 = vmatpush.msra.mxu0 0.0
    %248 = vmatpush.msra.mxu0 0.0
    %249 = vmatpush.msra.mxu0 0.0
    %250 = vmatpush.msra.mxu0 0.0
    %251 = vmatpush.msra.mxu0 0.0
    %252 = vmatpush.msra.mxu0 0.0
    %253 = vmatpush.msra.mxu0 0.0
    %254 = vmatpush.msra.mxu0 0.0
    %255 = vmatpush.msra.mxu0 0.0
    %256 = vmatpush.msra.mxu0 0.0
    %257 = vmatpush.msra.mxu0 0.0
    %258 = vmatpush.msra.mxu0 %v45
    %259 = vmatmul.f32.gmra.mxu0 %v131
    %v260 = vpop.f32.mrf.mxu0
    %v261 = vadd.f32 %v124, %v260
    %262 = vmatmul.f32.gmra.mxu0 %v134
    %v263 = vpop.f32.mrf.mxu0
    %v264 = vadd.f32 %v124, %v263
    %265 = vmatmul.f32.gmra.mxu0 %v137
    %v266 = vpop.f32.mrf.mxu0
    %v267 = vadd.f32 %v124, %v266
    %268 = vmatmul.f32.gmra.mxu0 %v140
    %v269 = vpop.f32.mrf.mxu0
    %v270 = vadd.f32 %v124, %v269
    %271 = vmatmul.f32.gmra.mxu0 %v143
    %v272 = vpop.f32.mrf.mxu0
    %v273 = vadd.f32 %v124, %v272
    %274 = vmatmul.f32.gmra.mxu0 %v146
    %v275 = vpop.f32.mrf.mxu0
    %v276 = vadd.f32 %v124, %v275
    %277 = vmatmul.f32.gmra.mxu0 %v149
    %v278 = vpop.f32.mrf.mxu0
    %v279 = vadd.f32 %v124, %v278
    %280 = vmatmul.f32.gmra.mxu0 %v152
    %v281 = vpop.f32.mrf.mxu0
    %v282 = vadd.f32 %v124, %v281
    %283 = vmatmul.f32.gmra.mxu0 %v155
    %v284 = vpop.f32.mrf.mxu0
    %v285 = vadd.f32 %v124, %v284
    %286 = vmatmul.f32.gmra.mxu0 %v158
    %v287 = vpop.f32.mrf.mxu0
    %v288 = vadd.f32 %v124, %v287
    %289 = vmatmul.f32.gmra.mxu0 %v161
    %v290 = vpop.f32.mrf.mxu0
    %v291 = vadd.f32 %v124, %v290
    %292 = vmatmul.f32.gmra.mxu0 %v164
    %v293 = vpop.f32.mrf.mxu0
    %v294 = vadd.f32 %v124, %v293
    %295 = vmatmul.f32.gmra.mxu0 %v167
    %v296 = vpop.f32.mrf.mxu0
    %v297 = vadd.f32 %v124, %v296
    %298 = vmatmul.f32.gmra.mxu0 %v170
    %v299 = vpop.f32.mrf.mxu0
    %v300 = vadd.f32 %v124, %v299
    %301 = vmatmul.f32.gmra.mxu0 %v173
    %v302 = vpop.f32.mrf.mxu0
    %v303 = vadd.f32 %v124, %v302
    %304 = vmatmul.f32.gmra.mxu0 %v176
    %v305 = vpop.f32.mrf.mxu0
    %v306 = vadd.f32 %v124, %v305
    %307 = vdwg.mxu0
    %308 = vmatpush.msra.mxu0 0.0
    %309 = vmatpush.msra.mxu0 0.0
    %310 = vmatpush.msra.mxu0 0.0
    %311 = vmatpush.msra.mxu0 0.0
    %312 = vmatpush.msra.mxu0 0.0
    %313 = vmatpush.msra.mxu0 0.0
    %314 = vmatpush.msra.mxu0 0.0
    %315 = vmatpush.msra.mxu0 0.0
    %316 = vmatpush.msra.mxu0 0.0
    %317 = vmatpush.msra.mxu0 0.0
    %318 = vmatpush.msra.mxu0 0.0
    %319 = vmatpush.msra.mxu0 0.0
    %320 = vmatpush.msra.mxu0 0.0
    %321 = vmatpush.msra.mxu0 0.0
    %322 = vmatpush.msra.mxu0 0.0
    %323 = vmatpush.msra.mxu0 %v46
    %324 = vmatmul.f32.gmra.mxu0 %v131
    %v325 = vpop.f32.mrf.mxu0
    %v326 = vadd.f32 %v125, %v325
    %327 = vmatmul.f32.gmra.mxu0 %v134
    %v328 = vpop.f32.mrf.mxu0
    %v329 = vadd.f32 %v125, %v328
    %330 = vmatmul.f32.gmra.mxu0 %v137
    %v331 = vpop.f32.mrf.mxu0
    %v332 = vadd.f32 %v125, %v331
    %333 = vmatmul.f32.gmra.mxu0 %v140
    %v334 = vpop.f32.mrf.mxu0
    %v335 = vadd.f32 %v125, %v334
    %336 = vmatmul.f32.gmra.mxu0 %v143
    %v337 = vpop.f32.mrf.mxu0
    %v338 = vadd.f32 %v125, %v337
    %339 = vmatmul.f32.gmra.mxu0 %v146
    %v340 = vpop.f32.mrf.mxu0
    %v341 = vadd.f32 %v125, %v340
    %342 = vmatmul.f32.gmra.mxu0 %v149
    %v343 = vpop.f32.mrf.mxu0
    %v344 = vadd.f32 %v125, %v343
    %345 = vmatmul.f32.gmra.mxu0 %v152
    %v346 = vpop.f32.mrf.mxu0
    %v347 = vadd.f32 %v125, %v346
    %348 = vmatmul.f32.gmra.mxu0 %v155
    %v349 = vpop.f32.mrf.mxu0
    %v350 = vadd.f32 %v125, %v349
    %351 = vmatmul.f32.gmra.mxu0 %v158
    %v352 = vpop.f32.mrf.mxu0
    %v353 = vadd.f32 %v125, %v352
    %354 = vmatmul.f32.gmra.mxu0 %v161
    %v355 = vpop.f32.mrf.mxu0
    %v356 = vadd.f32 %v125, %v355
    %357 = vmatmul.f32.gmra.mxu0 %v164
    %v358 = vpop.f32.mrf.mxu0
    %v359 = vadd.f32 %v125, %v358
    %360 = vmatmul.f32.gmra.mxu0 %v167
    %v361 = vpop.f32.mrf.mxu0
    %v362 = vadd.f32 %v125, %v361
    %363 = vmatmul.f32.gmra.mxu0 %v170
    %v364 = vpop.f32.mrf.mxu0
    %v365 = vadd.f32 %v125, %v364
    %366 = vmatmul.f32.gmra.mxu0 %v173
    %v367 = vpop.f32.mrf.mxu0
    %v368 = vadd.f32 %v125, %v367
    %369 = vmatmul.f32.gmra.mxu0 %v176
    %v370 = vpop.f32.mrf.mxu0
    %v371 = vadd.f32 %v125, %v370
    %372 = vdwg.mxu0
    %373 = vst [vmem:[#allocation2] sm:$0xff] %v196
    %374 = vst [vmem:[#allocation2 + $0x8] sm:$0xff] %v261
    %375 = vst [vmem:[#allocation2 + $0x10] sm:$0xff] %v326
    %376 = vst [vmem:[#allocation2 + $0x18] sm:$0xff] %v199
    %377 = vst [vmem:[#allocation2 + $0x20] sm:$0xff] %v264
    %378 = vst [vmem:[#allocation2 + $0x28] sm:$0xff] %v329
    %379 = vst [vmem:[#allocation2 + $0x30] sm:$0xff] %v202
    %380 = vst [vmem:[#allocation2 + $0x38] sm:$0xff] %v267
    %381 = vst [vmem:[#allocation2 + $0x40] sm:$0xff] %v332
    %382 = vst [vmem:[#allocation2 + $0x48] sm:$0xff] %v205
    %383 = vst [vmem:[#allocation2 + $0x50] sm:$0xff] %v270
    %384 = vst [vmem:[#allocation2 + $0x58] sm:$0xff] %v335
    %385 = vst [vmem:[#allocation2 + $0x60] sm:$0xff] %v208
    %386 = vst [vmem:[#allocation2 + $0x68] sm:$0xff] %v273
    %387 = vst [vmem:[#allocation2 + $0x70] sm:$0xff] %v338
    %388 = vst [vmem:[#allocation2 + $0x78] sm:$0xff] %v211
    %389 = vst [vmem:[#allocation2 + $0x80] sm:$0xff] %v276
    %390 = vst [vmem:[#allocation2 + $0x88] sm:$0xff] %v341
    %391 = vst [vmem:[#allocation2 + $0x90] sm:$0xff] %v214
    %392 = vst [vmem:[#allocation2 + $0x98] sm:$0xff] %v279
    %393 = vst [vmem:[#allocation2 + $0xa0] sm:$0xff] %v344
    %394 = vst [vmem:[#allocation2 + $0xa8] sm:$0xff] %v217
    %395 = vst [vmem:[#allocation2 + $0xb0] sm:$0xff] %v282
    %396 = vst [vmem:[#allocation2 + $0xb8] sm:$0xff] %v347
    %397 = vst [vmem:[#allocation2 + $0xc0] sm:$0xff] %v220
    %398 = vst [vmem:[#allocation2 + $0xc8] sm:$0xff] %v285
    %399 = vst [vmem:[#allocation2 + $0xd0] sm:$0xff] %v350
    %400 = vst [vmem:[#allocation2 + $0xd8] sm:$0xff] %v223
    %401 = vst [vmem:[#allocation2 + $0xe0] sm:$0xff] %v288
    %402 = vst [vmem:[#allocation2 + $0xe8] sm:$0xff] %v353
    %403 = vst [vmem:[#allocation2 + $0xf0] sm:$0xff] %v226
    %404 = vst [vmem:[#allocation2 + $0xf8] sm:$0xff] %v291
    %405 = vst [vmem:[#allocation2 + $0x100] sm:$0xff] %v356
    %406 = vst [vmem:[#allocation2 + $0x108] sm:$0xff] %v229
    %407 = vst [vmem:[#allocation2 + $0x110] sm:$0xff] %v294
    %408 = vst [vmem:[#allocation2 + $0x118] sm:$0xff] %v359
    %409 = vst [vmem:[#allocation2 + $0x120] sm:$0xff] %v232
    %410 = vst [vmem:[#allocation2 + $0x128] sm:$0xff] %v297
    %411 = vst [vmem:[#allocation2 + $0x130] sm:$0xff] %v362
    %412 = vst [vmem:[#allocation2 + $0x138] sm:$0xff] %v235
    %413 = vst [vmem:[#allocation2 + $0x140] sm:$0xff] %v300
    %414 = vst [vmem:[#allocation2 + $0x148] sm:$0xff] %v365
    %415 = vst [vmem:[#allocation2 + $0x150] sm:$0xff] %v238
    %416 = vst [vmem:[#allocation2 + $0x158] sm:$0xff] %v303
    %417 = vst [vmem:[#allocation2 + $0x160] sm:$0xff] %v368
    %418 = vst [vmem:[#allocation2 + $0x168] sm:$0xff] %v241
    %419 = vst [vmem:[#allocation2 + $0x170] sm:$0xff] %v306
    %420 = vst [vmem:[#allocation2 + $0x178] sm:$0xff] %v371
    %s421 = smul.u32 0, 3
    %s422 = smul.addr %s421, 8
    %s423 = scalar_lea.vmem [#allocation2], %s422
    %v424 = vld [vmem:[%s423] sm:$0xff]
    %v425 = vld [vmem:[%s423 + $0x8] sm:$0xff]
    %v426 = vld [vmem:[%s423 + $0x10] sm:$0xff]
    %427 = vmatpush.msra.mxu0 %v92
    %428 = vmatpush.msra.mxu0 %v89
    %429 = vmatpush.msra.mxu0 %v86
    %430 = vmatpush.msra.mxu0 %v83
    %431 = vmatpush.msra.mxu0 %v80
    %432 = vmatpush.msra.mxu0 %v77
    %433 = vmatpush.msra.mxu0 %v74
    %434 = vmatpush.msra.mxu0 %v71
    %435 = vmatpush.msra.mxu0 %v68
    %436 = vmatpush.msra.mxu0 %v65
    %437 = vmatpush.msra.mxu0 %v62
    %438 = vmatpush.msra.mxu0 %v59
    %439 = vmatpush.msra.mxu0 %v56
    %440 = vmatpush.msra.mxu0 %v53
    %441 = vmatpush.msra.mxu0 %v50
    %442 = vmatpush.msra.mxu0 %v47
    %443 = vmatmul.f32.gmra.mxu0 0.0
    %v444 = vpop.f32.mrf.mxu0
    %v445 = vadd.f32 %v100, %v444
    %446 = vdwg.mxu0
    %447 = vmatpush.msra.mxu0 %v93
    %448 = vmatpush.msra.mxu0 %v90
    %449 = vmatpush.msra.mxu0 %v87
    %450 = vmatpush.msra.mxu0 %v84
    %451 = vmatpush.msra.mxu0 %v81
    %452 = vmatpush.msra.mxu0 %v78
    %453 = vmatpush.msra.mxu0 %v75
    %454 = vmatpush.msra.mxu0 %v72
    %455 = vmatpush.msra.mxu0 %v69
    %456 = vmatpush.msra.mxu0 %v66
    %457 = vmatpush.msra.mxu0 %v63
    %458 = vmatpush.msra.mxu0 %v60
    %459 = vmatpush.msra.mxu0 %v57
    %460 = vmatpush.msra.mxu0 %v54
    %461 = vmatpush.msra.mxu0 %v51
    %462 = vmatpush.msra.mxu0 %v48
    %463 = vmatmul.f32.gmra.mxu0 0.0
    %v464 = vpop.f32.mrf.mxu0
    %v465 = vadd.f32 %v101, %v464
    %466 = vdwg.mxu0
    %467 = vmatpush.msra.mxu0 %v94
    %468 = vmatpush.msra.mxu0 %v91
    %469 = vmatpush.msra.mxu0 %v88
    %470 = vmatpush.msra.mxu0 %v85
    %471 = vmatpush.msra.mxu0 %v82
    %472 = vmatpush.msra.mxu0 %v79
    %473 = vmatpush.msra.mxu0 %v76
    %474 = vmatpush.msra.mxu0 %v73
    %475 = vmatpush.msra.mxu0 %v70
    %476 = vmatpush.msra.mxu0 %v67
    %477 = vmatpush.msra.mxu0 %v64
    %478 = vmatpush.msra.mxu0 %v61
    %479 = vmatpush.msra.mxu0 %v58
    %480 = vmatpush.msra.mxu0 %v55
    %481 = vmatpush.msra.mxu0 %v52
    %482 = vmatpush.msra.mxu0 %v49
    %483 = vmatmul.f32.gmra.mxu0 0.0
    %v484 = vpop.f32.mrf.mxu0
    %v485 = vadd.f32 %v102, %v484
    %486 = vdwg.mxu0
    %v487 = vadd.f32 %v424, %v445
    %v488 = vadd.f32 %v425, %v465
    %v489 = vmul.f32 %v487, 0.5
    %v490 = vmul.f32 %v488, 0.5
    %v491 = vtanh.pop %v489
    %v492 = vtanh.pop %v490
    %v493 = vadd.f32 %v491, 1.0
    %v494 = vadd.f32 %v492, 1.0
    %v495 = vmul.f32 %v493, 0.5
    %v496 = vmul.f32 %v494, 0.5
    %v497 = vmul.f32 %v495, %v485
    %v498 = vadd.f32 %v426, %v497
    %v499 = vtanh.pop %v498
    %v500 = vsub.f32 1.0, %v496
    %v501 = vmul.f32 %v500, %v499
    %v502 = vmul.f32 %v496, 0.0
    %v503 = vadd.f32 %v501, %v502
    %s504 = smul.u32 1, 3
    %s505 = smul.addr %s504, 8
    %s506 = scalar_lea.vmem [#allocation2], %s505
    %v507 = vld [vmem:[%s506] sm:$0xff]
    %v508 = vld [vmem:[%s506 + $0x8] sm:$0xff]
    %v509 = vld [vmem:[%s506 + $0x10] sm:$0xff]
    %510 = vmatpush.msra.mxu0 %v92
    %511 = vmatpush.msra.mxu0 %v89
    %512 = vmatpush.msra.mxu0 %v86
    %513 = vmatpush.msra.mxu0 %v83
    %514 = vmatpush.msra.mxu0 %v80
    %515 = vmatpush.msra.mxu0 %v77
    %516 = vmatpush.msra.mxu0 %v74
    %517 = vmatpush.msra.mxu0 %v71
    %518 = vmatpush.msra.mxu0 %v68
    %519 = vmatpush.msra.mxu0 %v65
    %520 = vmatpush.msra.mxu0 %v62
    %521 = vmatpush.msra.mxu0 %v59
    %522 = vmatpush.msra.mxu0 %v56
    %523 = vmatpush.msra.mxu0 %v53
    %524 = vmatpush.msra.mxu0 %v50
    %525 = vmatpush.msra.mxu0 %v47
    %526 = vmatmul.f32.gmra.mxu0 %v503
    %v527 = vpop.f32.mrf.mxu0
    %v528 = vadd.f32 %v100, %v527
    %529 = vdwg.mxu0
    %530 = vmatpush.msra.mxu0 %v93
    %531 = vmatpush.msra.mxu0 %v90
    %532 = vmatpush.msra.mxu0 %v87
    %533 = vmatpush.msra.mxu0 %v84
    %534 = vmatpush.msra.mxu0 %v81
    %535 = vmatpush.msra.mxu0 %v78
    %536 = vmatpush.msra.mxu0 %v75
    %537 = vmatpush.msra.mxu0 %v72
    %538 = vmatpush.msra.mxu0 %v69
    %539 = vmatpush.msra.mxu0 %v66
    %540 = vmatpush.msra.mxu0 %v63
    %541 = vmatpush.msra.mxu0 %v60
    %542 = vmatpush.msra.mxu0 %v57
    %543 = vmatpush.msra.mxu0 %v54
    %544 = vmatpush.msra.mxu0 %v51
    %545 = vmatpush.msra.mxu0 %v48
    %546 = vmatmul.f32.gmra.mxu0 %v503
    %v547 = vpop.f32.mrf.mxu0
    %v548 = vadd.f32 %v101, %v547
    %549 = vdwg.mxu0
    %550 = vmatpush.msra.mxu0 %v94
    %551 = vmatpush.msra.mxu0 %v91
    %552 = vmatpush.msra.mxu0 %v88
    %553 = vmatpush.msra.mxu0 %v85
    %554 = vmatpush.msra.mxu0 %v82
    %555 = vmatpush.msra.mxu0 %v79
    %556 = vmatpush.msra.mxu0 %v76
    %557 = vmatpush.msra.mxu0 %v73
    %558 = vmatpush.msra.mxu0 %v70
    %559 = vmatpush.msra.mxu0 %v67
    %560 = vmatpush.msra.mxu0 %v64
    %561 = vmatpush.msra.mxu0 %v61
    %562 = vmatpush.msra.mxu0 %v58
    %563 = vmatpush.msra.mxu0 %v55
    %564 = vmatpush.msra.mxu0 %v52
    %565 = vmatpush.msra.mxu0 %v49
    %566 = vmatmul.f32.gmra.mxu0 %v503
    %v567 = vpop.f32.mrf.mxu0
    %v568 = vadd.f32 %v102, %v567
    %569 = vdwg.mxu0
    %v570 = vadd.f32 %v507, %v528
    %v571 = vadd.f32 %v508, %v548
    %v572 = vmul.f32 %v570, 0.5
    %v573 = vmul.f32 %v571, 0.5
    %v574 = vtanh.pop %v572
    %v575 = vtanh.pop %v573
    %v576 = vadd.f32 %v574, 1.0
    %v577 = vadd.f32 %v575, 1.0
    %v578 = vmul.f32 %v576, 0.5
    %v579 = vmul.f32 %v577, 0.5
    %v580 = vmul.f32 %v578, %v568
    %v581 = vadd.f32 %v509, %v580
    %v582 = vtanh.pop %v581
    %v583 = vsub.f32 1.0, %v579
    %v584 = vmul.f32 %v583, %v582
    %v585 = vmul.f32 %v579, %v503
    %v586 = vadd.f32 %v584, %v585
    %s587 = smul.u32 2, 3
    %s588 = smul.addr %s587, 8
    %s589 = scalar_lea.vmem [#allocation2], %s588
    %v590 = vld [vmem:[%s589] sm:$0xff]
    %v591 = vld [vmem:[%s589 + $0x8] sm:$0xff]
    %v592 = vld [vmem:[%s589 + $0x10] sm:$0xff]
    %593 = vmatpush.msra.mxu0 %v92
    %594 = vmatpush.msra.mxu0 %v89
    %595 = vmatpush.msra.mxu0 %v86
    %596 = vmatpush.msra.mxu0 %v83
    %597 = vmatpush.msra.mxu0 %v80
    %598 = vmatpush.msra.mxu0 %v77
    %599 = vmatpush.msra.mxu0 %v74
    %600 = vmatpush.msra.mxu0 %v71
    %601 = vmatpush.msra.mxu0 %v68
    %602 = vmatpush.msra.mxu0 %v65
    %603 = vmatpush.msra.mxu0 %v62
    %604 = vmatpush.msra.mxu0 %v59
    %605 = vmatpush.msra.mxu0 %v56
    %606 = vmatpush.msra.mxu0 %v53
    %607 = vmatpush.msra.mxu0 %v50
    %608 = vmatpush.msra.mxu0 %v47
    %609 = vmatmul.f32.gmra.mxu0 %v586
    %v610 = vpop.f32.mrf.mxu0
    %v611 = vadd.f32 %v100, %v610
    %612 = vdwg.mxu0
    %613 = vmatpush.msra.mxu0 %v93
    %614 = vmatpush.msra.mxu0 %v90
    %615 = vmatpush.msra.mxu0 %v87
    %616 = vmatpush.msra.mxu0 %v84
    %617 = vmatpush.msra.mxu0 %v81
    %618 = vmatpush.msra.mxu0 %v78
    %619 = vmatpush.msra.mxu0 %v75
    %620 = vmatpush.msra.mxu0 %v72
    %621 = vmatpush.msra.mxu0 %v69
    %622 = vmatpush.msra.mxu0 %v66
    %623 = vmatpush.msra.mxu0 %v63
    %624 = vmatpush.msra.mxu0 %v60
    %625 = vmatpush.msra.mxu0 %v57
    %626 = vmatpush.msra.mxu0 %v54
    %627 = vmatpush.msra.mxu0 %v51
    %628 = vmatpush.msra.mxu0 %v48
    %629 = vmatmul.f32.gmra.mxu0 %v586
    %v630 = vpop.f32.mrf.mxu0
    %v631 = vadd.f32 %v101, %v630
    %632 = vdwg.mxu0
    %633 = vmatpush.msra.mxu0 %v94
    %634 = vmatpush.msra.mxu0 %v91
    %635 = vmatpush.msra.mxu0 %v88
    %636 = vmatpush.msra.mxu0 %v85
    %637 = vmatpush.msra.mxu0 %v82
    %638 = vmatpush.msra.mxu0 %v79
    %639 = vmatpush.msra.mxu0 %v76
    %640 = vmatpush.msra.mxu0 %v73
    %641 = vmatpush.msra.mxu0 %v70
    %642 = vmatpush.msra.mxu0 %v67
    %643 = vmatpush.msra.mxu0 %v64
    %644 = vmatpush.msra.mxu0 %v61
    %645 = vmatpush.msra.mxu0 %v58
    %646 = vmatpush.msra.mxu0 %v55
    %647 = vmatpush.msra.mxu0 %v52
    %648 = vmatpush.msra.mxu0 %v49
    %649 = vmatmul.f32.gmra.mxu0 %v586
    %v650 = vpop.f32.mrf.mxu0
    %v651 = vadd.f32 %v102, %v650
    %652 = vdwg.mxu0
    %v653 = vadd.f32 %v590, %v611
    %v654 = vadd.f32 %v591, %v631
    %v655 = vmul.f32 %v653, 0.5
    %v656 = vmul.f32 %v654, 0.5
    %v657 = vtanh.pop %v655
    %v658 = vtanh.pop %v656
    %v659 = vadd.f32 %v657, 1.0
    %v660 = vadd.f32 %v658, 1.0
    %v661 = vmul.f32 %v659, 0.5
    %v662 = vmul.f32 %v660, 0.5
    %v663 = vmul.f32 %v661, %v651
    %v664 = vadd.f32 %v592, %v663
    %v665 = vtanh.pop %v664
    %v666 = vsub.f32 1.0, %v662
    %v667 = vmul.f32 %v666, %v665
    %v668 = vmul.f32 %v662, %v586
    %v669 = vadd.f32 %v667, %v668
    %s670 = smul.u32 3, 3
    %s671 = smul.addr %s670, 8
    %s672 = scalar_lea.vmem [#allocation2], %s671
    %v673 = vld [vmem:[%s672] sm:$0xff]
    %v674 = vld [vmem:[%s672 + $0x8] sm:$0xff]
    %v675 = vld [vmem:[%s672 + $0x10] sm:$0xff]
    %676 = vmatpush.msra.mxu0 %v92
    %677 = vmatpush.msra.mxu0 %v89
    %678 = vmatpush.msra.mxu0 %v86
    %679 = vmatpush.msra.mxu0 %v83
    %680 = vmatpush.msra.mxu0 %v80
    %681 = vmatpush.msra.mxu0 %v77
    %682 = vmatpush.msra.mxu0 %v74
    %683 = vmatpush.msra.mxu0 %v71
    %684 = vmatpush.msra.mxu0 %v68
    %685 = vmatpush.msra.mxu0 %v65
    %686 = vmatpush.msra.mxu0 %v62
    %687 = vmatpush.msra.mxu0 %v59
    %688 = vmatpush.msra.mxu0 %v56
    %689 = vmatpush.msra.mxu0 %v53
    %690 = vmatpush.msra.mxu0 %v50
    %691 = vmatpush.msra.mxu0 %v47
    %692 = vmatmul.f32.gmra.mxu0 %v669
    %v693 = vpop.f32.mrf.mxu0
    %v694 = vadd.f32 %v100, %v693
    %695 = vdwg.mxu0
    %696 = vmatpush.msra.mxu0 %v93
    %697 = vmatpush.msra.mxu0 %v90
    %698 = vmatpush.msra.mxu0 %v87
    %699 = vmatpush.msra.mxu0 %v84
    %700 = vmatpush.msra.mxu0 %v81
    %701 = vmatpush.msra.mxu0 %v78
    %702 = vmatpush.msra.mxu0 %v75
    %703 = vmatpush.msra.mxu0 %v72
    %704 = vmatpush.msra.mxu0 %v69
    %705 = vmatpush.msra.mxu0 %v66
    %706 = vmatpush.msra.mxu0 %v63
    %707 = vmatpush.msra.mxu0 %v60
    %708 = vmatpush.msra.mxu0 %v57
    %709 = vmatpush.msra.mxu0 %v54
    %710 = vmatpush.msra.mxu0 %v51
    %711 = vmatpush.msra.mxu0 %v48
    %712 = vmatmul.f32.gmra.mxu0 %v669
    %v713 = vpop.f32.mrf.mxu0
    %v714 = vadd.f32 %v101, %v713
    %715 = vdwg.mxu0
    %716 = vmatpush.msra.mxu0 %v94
    %717 = vmatpush.msra.mxu0 %v91
    %718 = vmatpush.msra.mxu0 %v88
    %719 = vmatpush.msra.mxu0 %v85
    %720 = vmatpush.msra.mxu0 %v82
    %721 = vmatpush.msra.mxu0 %v79
    %722 = vmatpush.msra.mxu0 %v76
    %723 = vmatpush.msra.mxu0 %v73
    %724 = vmatpush.msra.mxu0 %v70
    %725 = vmatpush.msra.mxu0 %v67
    %726 = vmatpush.msra.mxu0 %v64
    %727 = vmatpush.msra.mxu0 %v61
    %728 = vmatpush.msra.mxu0 %v58
    %729 = vmatpush.msra.mxu0 %v55
    %730 = vmatpush.msra.mxu0 %v52
    %731 = vmatpush.msra.mxu0 %v49
    %732 = vmatmul.f32.gmra.mxu0 %v669
    %v733 = vpop.f32.mrf.mxu0
    %v734 = vadd.f32 %v102, %v733
    %735 = vdwg.mxu0
    %v736 = vadd.f32 %v673, %v694
    %v737 = vadd.f32 %v674, %v714
    %v738 = vmul.f32 %v736, 0.5
    %v739 = vmul.f32 %v737, 0.5
    %v740 = vtanh.pop %v738
    %v741 = vtanh.pop %v739
    %v742 = vadd.f32 %v740, 1.0
    %v743 = vadd.f32 %v741, 1.0
    %v744 = vmul.f32 %v742, 0.5
    %v745 = vmul.f32 %v743, 0.5
    %v746 = vmul.f32 %v744, %v734
    %v747 = vadd.f32 %v675, %v746
    %v748 = vtanh.pop %v747
    %v749 = vsub.f32 1.0, %v745
    %v750 = vmul.f32 %v749, %v748
    %v751 = vmul.f32 %v745, %v669
    %v752 = vadd.f32 %v750, %v751
    %s753 = smul.u32 4, 3
    %s754 = smul.addr %s753, 8
    %s755 = scalar_lea.vmem [#allocation2], %s754
    %v756 = vld [vmem:[%s755] sm:$0xff]
    %v757 = vld [vmem:[%s755 + $0x8] sm:$0xff]
    %v758 = vld [vmem:[%s755 + $0x10] sm:$0xff]
    %759 = vmatpush.msra.mxu0 %v92
    %760 = vmatpush.msra.mxu0 %v89
    %761 = vmatpush.msra.mxu0 %v86
    %762 = vmatpush.msra.mxu0 %v83
    %763 = vmatpush.msra.mxu0 %v80
    %764 = vmatpush.msra.mxu0 %v77
    %765 = vmatpush.msra.mxu0 %v74
    %766 = vmatpush.msra.mxu0 %v71
    %767 = vmatpush.msra.mxu0 %v68
    %768 = vmatpush.msra.mxu0 %v65
    %769 = vmatpush.msra.mxu0 %v62
    %770 = vmatpush.msra.mxu0 %v59
    %771 = vmatpush.msra.mxu0 %v56
    %772 = vmatpush.msra.mxu0 %v53
    %773 = vmatpush.msra.mxu0 %v50
    %774 = vmatpush.msra.mxu0 %v47
    %775 = vmatmul.f32.gmra.mxu0 %v752
    %v776 = vpop.f32.mrf.mxu0
    %v777 = vadd.f32 %v100, %v776
    %778 = vdwg.mxu0
    %779 = vmatpush.msra.mxu0 %v93
    %780 = vmatpush.msra.mxu0 %v90
    %781 = vmatpush.msra.mxu0 %v87
    %782 = vmatpush.msra.mxu0 %v84
    %783 = vmatpush.msra.mxu0 %v81
    %784 = vmatpush.msra.mxu0 %v78
    %785 = vmatpush.msra.mxu0 %v75
    %786 = vmatpush.msra.mxu0 %v72
    %787 = vmatpush.msra.mxu0 %v69
    %788 = vmatpush.msra.mxu0 %v66
    %789 = vmatpush.msra.mxu0 %v63
    %790 = vmatpush.msra.mxu0 %v60
    %791 = vmatpush.msra.mxu0 %v57
    %792 = vmatpush.msra.mxu0 %v54
    %793 = vmatpush.msra.mxu0 %v51
    %794 = vmatpush.msra.mxu0 %v48
    %795 = vmatmul.f32.gmra.mxu0 %v752
    %v796 = vpop.f32.mrf.mxu0
    %v797 = vadd.f32 %v101, %v796
    %798 = vdwg.mxu0
    %799 = vmatpush.msra.mxu0 %v94
    %800 = vmatpush.msra.mxu0 %v91
    %801 = vmatpush.msra.mxu0 %v88
    %802 = vmatpush.msra.mxu0 %v85
    %803 = vmatpush.msra.mxu0 %v82
    %804 = vmatpush.msra.mxu0 %v79
    %805 = vmatpush.msra.mxu0 %v76
    %806 = vmatpush.msra.mxu0 %v73
    %807 = vmatpush.msra.mxu0 %v70
    %808 = vmatpush.msra.mxu0 %v67
    %809 = vmatpush.msra.mxu0 %v64
    %810 = vmatpush.msra.mxu0 %v61
    %811 = vmatpush.msra.mxu0 %v58
    %812 = vmatpush.msra.mxu0 %v55
    %813 = vmatpush.msra.mxu0 %v52
    %814 = vmatpush.msra.mxu0 %v49
    %815 = vmatmul.f32.gmra.mxu0 %v752
    %v816 = vpop.f32.mrf.mxu0
    %v817 = vadd.f32 %v102, %v816
    %818 = vdwg.mxu0
    %v819 = vadd.f32 %v756, %v777
    %v820 = vadd.f32 %v757, %v797
    %v821 = vmul.f32 %v819, 0.5
    %v822 = vmul.f32 %v820, 0.5
    %v823 = vtanh.pop %v821
    %v824 = vtanh.pop %v822
    %v825 = vadd.f32 %v823, 1.0
    %v826 = vadd.f32 %v824, 1.0
    %v827 = vmul.f32 %v825, 0.5
    %v828 = vmul.f32 %v826, 0.5
    %v829 = vmul.f32 %v827, %v817
    %v830 = vadd.f32 %v758, %v829
    %v831 = vtanh.pop %v830
    %v832 = vsub.f32 1.0, %v828
    %v833 = vmul.f32 %v832, %v831
    %v834 = vmul.f32 %v828, %v752
    %v835 = vadd.f32 %v833, %v834
    %s836 = smul.u32 5, 3
    %s837 = smul.addr %s836, 8
    %s838 = scalar_lea.vmem [#allocation2], %s837
    %v839 = vld [vmem:[%s838] sm:$0xff]
    %v840 = vld [vmem:[%s838 + $0x8] sm:$0xff]
    %v841 = vld [vmem:[%s838 + $0x10] sm:$0xff]
    %842 = vmatpush.msra.mxu0 %v92
    %843 = vmatpush.msra.mxu0 %v89
    %844 = vmatpush.msra.mxu0 %v86
    %845 = vmatpush.msra.mxu0 %v83
    %846 = vmatpush.msra.mxu0 %v80
    %847 = vmatpush.msra.mxu0 %v77
    %848 = vmatpush.msra.mxu0 %v74
    %849 = vmatpush.msra.mxu0 %v71
    %850 = vmatpush.msra.mxu0 %v68
    %851 = vmatpush.msra.mxu0 %v65
    %852 = vmatpush.msra.mxu0 %v62
    %853 = vmatpush.msra.mxu0 %v59
    %854 = vmatpush.msra.mxu0 %v56
    %855 = vmatpush.msra.mxu0 %v53
    %856 = vmatpush.msra.mxu0 %v50
    %857 = vmatpush.msra.mxu0 %v47
    %858 = vmatmul.f32.gmra.mxu0 %v835
    %v859 = vpop.f32.mrf.mxu0
    %v860 = vadd.f32 %v100, %v859
    %861 = vdwg.mxu0
    %862 = vmatpush.msra.mxu0 %v93
    %863 = vmatpush.msra.mxu0 %v90
    %864 = vmatpush.msra.mxu0 %v87
    %865 = vmatpush.msra.mxu0 %v84
    %866 = vmatpush.msra.mxu0 %v81
    %867 = vmatpush.msra.mxu0 %v78
    %868 = vmatpush.msra.mxu0 %v75
    %869 = vmatpush.msra.mxu0 %v72
    %870 = vmatpush.msra.mxu0 %v69
    %871 = vmatpush.msra.mxu0 %v66
    %872 = vmatpush.msra.mxu0 %v63
    %873 = vmatpush.msra.mxu0 %v60
    %874 = vmatpush.msra.mxu0 %v57
    %875 = vmatpush.msra.mxu0 %v54
    %876 = vmatpush.msra.mxu0 %v51
    %877 = vmatpush.msra.mxu0 %v48
    %878 = vmatmul.f32.gmra.mxu0 %v835
    %v879 = vpop.f32.mrf.mxu0
    %v880 = vadd.f32 %v101, %v879
    %881 = vdwg.mxu0
    %882 = vmatpush.msra.mxu0 %v94
    %883 = vmatpush.msra.mxu0 %v91
    %884 = vmatpush.msra.mxu0 %v88
    %885 = vmatpush.msra.mxu0 %v85
    %886 = vmatpush.msra.mxu0 %v82
    %887 = vmatpush.msra.mxu0 %v79
    %888 = vmatpush.msra.mxu0 %v76
    %889 = vmatpush.msra.mxu0 %v73
    %890 = vmatpush.msra.mxu0 %v70
    %891 = vmatpush.msra.mxu0 %v67
    %892 = vmatpush.msra.mxu0 %v64
    %893 = vmatpush.msra.mxu0 %v61
    %894 = vmatpush.msra.mxu0 %v58
    %895 = vmatpush.msra.mxu0 %v55
    %896 = vmatpush.msra.mxu0 %v52
    %897 = vmatpush.msra.mxu0 %v49
    %898 = vmatmul.f32.gmra.mxu0 %v835
    %v899 = vpop.f32.mrf.mxu0
    %v900 = vadd.f32 %v102, %v899
    %901 = vdwg.mxu0
    %v902 = vadd.f32 %v839, %v860
    %v903 = vadd.f32 %v840, %v880
    %v904 = vmul.f32 %v902, 0.5
    %v905 = vmul.f32 %v903, 0.5
    %v906 = vtanh.pop %v904
    %v907 = vtanh.pop %v905
    %v908 = vadd.f32 %v906, 1.0
    %v909 = vadd.f32 %v907, 1.0
    %v910 = vmul.f32 %v908, 0.5
    %v911 = vmul.f32 %v909, 0.5
    %v912 = vmul.f32 %v910, %v900
    %v913 = vadd.f32 %v841, %v912
    %v914 = vtanh.pop %v913
    %v915 = vsub.f32 1.0, %v911
    %v916 = vmul.f32 %v915, %v914
    %v917 = vmul.f32 %v911, %v835
    %v918 = vadd.f32 %v916, %v917
    %s919 = smul.u32 6, 3
    %s920 = smul.addr %s919, 8
    %s921 = scalar_lea.vmem [#allocation2], %s920
    %v922 = vld [vmem:[%s921] sm:$0xff]
    %v923 = vld [vmem:[%s921 + $0x8] sm:$0xff]
    %v924 = vld [vmem:[%s921 + $0x10] sm:$0xff]
    %925 = vmatpush.msra.mxu0 %v92
    %926 = vmatpush.msra.mxu0 %v89
    %927 = vmatpush.msra.mxu0 %v86
    %928 = vmatpush.msra.mxu0 %v83
    %929 = vmatpush.msra.mxu0 %v80
    %930 = vmatpush.msra.mxu0 %v77
    %931 = vmatpush.msra.mxu0 %v74
    %932 = vmatpush.msra.mxu0 %v71
    %933 = vmatpush.msra.mxu0 %v68
    %934 = vmatpush.msra.mxu0 %v65
    %935 = vmatpush.msra.mxu0 %v62
    %936 = vmatpush.msra.mxu0 %v59
    %937 = vmatpush.msra.mxu0 %v56
    %938 = vmatpush.msra.mxu0 %v53
    %939 = vmatpush.msra.mxu0 %v50
    %940 = vmatpush.msra.mxu0 %v47
    %941 = vmatmul.f32.gmra.mxu0 %v918
    %v942 = vpop.f32.mrf.mxu0
    %v943 = vadd.f32 %v100, %v942
    %944 = vdwg.mxu0
    %945 = vmatpush.msra.mxu0 %v93
    %946 = vmatpush.msra.mxu0 %v90
    %947 = vmatpush.msra.mxu0 %v87
    %948 = vmatpush.msra.mxu0 %v84
    %949 = vmatpush.msra.mxu0 %v81
    %950 = vmatpush.msra.mxu0 %v78
    %951 = vmatpush.msra.mxu0 %v75
    %952 = vmatpush.msra.mxu0 %v72
    %953 = vmatpush.msra.mxu0 %v69
    %954 = vmatpush.msra.mxu0 %v66
    %955 = vmatpush.msra.mxu0 %v63
    %956 = vmatpush.msra.mxu0 %v60
    %957 = vmatpush.msra.mxu0 %v57
    %958 = vmatpush.msra.mxu0 %v54
    %959 = vmatpush.msra.mxu0 %v51
    %960 = vmatpush.msra.mxu0 %v48
    %961 = vmatmul.f32.gmra.mxu0 %v918
    %v962 = vpop.f32.mrf.mxu0
    %v963 = vadd.f32 %v101, %v962
    %964 = vdwg.mxu0
    %965 = vmatpush.msra.mxu0 %v94
    %966 = vmatpush.msra.mxu0 %v91
    %967 = vmatpush.msra.mxu0 %v88
    %968 = vmatpush.msra.mxu0 %v85
    %969 = vmatpush.msra.mxu0 %v82
    %970 = vmatpush.msra.mxu0 %v79
    %971 = vmatpush.msra.mxu0 %v76
    %972 = vmatpush.msra.mxu0 %v73
    %973 = vmatpush.msra.mxu0 %v70
    %974 = vmatpush.msra.mxu0 %v67
    %975 = vmatpush.msra.mxu0 %v64
    %976 = vmatpush.msra.mxu0 %v61
    %977 = vmatpush.msra.mxu0 %v58
    %978 = vmatpush.msra.mxu0 %v55
    %979 = vmatpush.msra.mxu0 %v52
    %980 = vmatpush.msra.mxu0 %v49
    %981 = vmatmul.f32.gmra.mxu0 %v918
    %v982 = vpop.f32.mrf.mxu0
    %v983 = vadd.f32 %v102, %v982
    %984 = vdwg.mxu0
    %v985 = vadd.f32 %v922, %v943
    %v986 = vadd.f32 %v923, %v963
    %v987 = vmul.f32 %v985, 0.5
    %v988 = vmul.f32 %v986, 0.5
    %v989 = vtanh.pop %v987
    %v990 = vtanh.pop %v988
    %v991 = vadd.f32 %v989, 1.0
    %v992 = vadd.f32 %v990, 1.0
    %v993 = vmul.f32 %v991, 0.5
    %v994 = vmul.f32 %v992, 0.5
    %v995 = vmul.f32 %v993, %v983
    %v996 = vadd.f32 %v924, %v995
    %v997 = vtanh.pop %v996
    %v998 = vsub.f32 1.0, %v994
    %v999 = vmul.f32 %v998, %v997
    %v1000 = vmul.f32 %v994, %v918
    %v1001 = vadd.f32 %v999, %v1000
    %s1002 = smul.u32 7, 3
    %s1003 = smul.addr %s1002, 8
    %s1004 = scalar_lea.vmem [#allocation2], %s1003
    %v1005 = vld [vmem:[%s1004] sm:$0xff]
    %v1006 = vld [vmem:[%s1004 + $0x8] sm:$0xff]
    %v1007 = vld [vmem:[%s1004 + $0x10] sm:$0xff]
    %1008 = vmatpush.msra.mxu0 %v92
    %1009 = vmatpush.msra.mxu0 %v89
    %1010 = vmatpush.msra.mxu0 %v86
    %1011 = vmatpush.msra.mxu0 %v83
    %1012 = vmatpush.msra.mxu0 %v80
    %1013 = vmatpush.msra.mxu0 %v77
    %1014 = vmatpush.msra.mxu0 %v74
    %1015 = vmatpush.msra.mxu0 %v71
    %1016 = vmatpush.msra.mxu0 %v68
    %1017 = vmatpush.msra.mxu0 %v65
    %1018 = vmatpush.msra.mxu0 %v62
    %1019 = vmatpush.msra.mxu0 %v59
    %1020 = vmatpush.msra.mxu0 %v56
    %1021 = vmatpush.msra.mxu0 %v53
    %1022 = vmatpush.msra.mxu0 %v50
    %1023 = vmatpush.msra.mxu0 %v47
    %1024 = vmatmul.f32.gmra.mxu0 %v1001
    %v1025 = vpop.f32.mrf.mxu0
    %v1026 = vadd.f32 %v100, %v1025
    %1027 = vdwg.mxu0
    %1028 = vmatpush.msra.mxu0 %v93
    %1029 = vmatpush.msra.mxu0 %v90
    %1030 = vmatpush.msra.mxu0 %v87
    %1031 = vmatpush.msra.mxu0 %v84
    %1032 = vmatpush.msra.mxu0 %v81
    %1033 = vmatpush.msra.mxu0 %v78
    %1034 = vmatpush.msra.mxu0 %v75
    %1035 = vmatpush.msra.mxu0 %v72
    %1036 = vmatpush.msra.mxu0 %v69
    %1037 = vmatpush.msra.mxu0 %v66
    %1038 = vmatpush.msra.mxu0 %v63
    %1039 = vmatpush.msra.mxu0 %v60
    %1040 = vmatpush.msra.mxu0 %v57
    %1041 = vmatpush.msra.mxu0 %v54
    %1042 = vmatpush.msra.mxu0 %v51
    %1043 = vmatpush.msra.mxu0 %v48
    %1044 = vmatmul.f32.gmra.mxu0 %v1001
    %v1045 = vpop.f32.mrf.mxu0
    %v1046 = vadd.f32 %v101, %v1045
    %1047 = vdwg.mxu0
    %1048 = vmatpush.msra.mxu0 %v94
    %1049 = vmatpush.msra.mxu0 %v91
    %1050 = vmatpush.msra.mxu0 %v88
    %1051 = vmatpush.msra.mxu0 %v85
    %1052 = vmatpush.msra.mxu0 %v82
    %1053 = vmatpush.msra.mxu0 %v79
    %1054 = vmatpush.msra.mxu0 %v76
    %1055 = vmatpush.msra.mxu0 %v73
    %1056 = vmatpush.msra.mxu0 %v70
    %1057 = vmatpush.msra.mxu0 %v67
    %1058 = vmatpush.msra.mxu0 %v64
    %1059 = vmatpush.msra.mxu0 %v61
    %1060 = vmatpush.msra.mxu0 %v58
    %1061 = vmatpush.msra.mxu0 %v55
    %1062 = vmatpush.msra.mxu0 %v52
    %1063 = vmatpush.msra.mxu0 %v49
    %1064 = vmatmul.f32.gmra.mxu0 %v1001
    %v1065 = vpop.f32.mrf.mxu0
    %v1066 = vadd.f32 %v102, %v1065
    %1067 = vdwg.mxu0
    %v1068 = vadd.f32 %v1005, %v1026
    %v1069 = vadd.f32 %v1006, %v1046
    %v1070 = vmul.f32 %v1068, 0.5
    %v1071 = vmul.f32 %v1069, 0.5
    %v1072 = vtanh.pop %v1070
    %v1073 = vtanh.pop %v1071
    %v1074 = vadd.f32 %v1072, 1.0
    %v1075 = vadd.f32 %v1073, 1.0
    %v1076 = vmul.f32 %v1074, 0.5
    %v1077 = vmul.f32 %v1075, 0.5
    %v1078 = vmul.f32 %v1076, %v1066
    %v1079 = vadd.f32 %v1007, %v1078
    %v1080 = vtanh.pop %v1079
    %v1081 = vsub.f32 1.0, %v1077
    %v1082 = vmul.f32 %v1081, %v1080
    %v1083 = vmul.f32 %v1077, %v1001
    %v1084 = vadd.f32 %v1082, %v1083
    %s1085 = smul.u32 8, 3
    %s1086 = smul.addr %s1085, 8
    %s1087 = scalar_lea.vmem [#allocation2], %s1086
    %v1088 = vld [vmem:[%s1087] sm:$0xff]
    %v1089 = vld [vmem:[%s1087 + $0x8] sm:$0xff]
    %v1090 = vld [vmem:[%s1087 + $0x10] sm:$0xff]
    %1091 = vmatpush.msra.mxu0 %v92
    %1092 = vmatpush.msra.mxu0 %v89
    %1093 = vmatpush.msra.mxu0 %v86
    %1094 = vmatpush.msra.mxu0 %v83
    %1095 = vmatpush.msra.mxu0 %v80
    %1096 = vmatpush.msra.mxu0 %v77
    %1097 = vmatpush.msra.mxu0 %v74
    %1098 = vmatpush.msra.mxu0 %v71
    %1099 = vmatpush.msra.mxu0 %v68
    %1100 = vmatpush.msra.mxu0 %v65
    %1101 = vmatpush.msra.mxu0 %v62
    %1102 = vmatpush.msra.mxu0 %v59
    %1103 = vmatpush.msra.mxu0 %v56
    %1104 = vmatpush.msra.mxu0 %v53
    %1105 = vmatpush.msra.mxu0 %v50
    %1106 = vmatpush.msra.mxu0 %v47
    %1107 = vmatmul.f32.gmra.mxu0 %v1084
    %v1108 = vpop.f32.mrf.mxu0
    %v1109 = vadd.f32 %v100, %v1108
    %1110 = vdwg.mxu0
    %1111 = vmatpush.msra.mxu0 %v93
    %1112 = vmatpush.msra.mxu0 %v90
    %1113 = vmatpush.msra.mxu0 %v87
    %1114 = vmatpush.msra.mxu0 %v84
    %1115 = vmatpush.msra.mxu0 %v81
    %1116 = vmatpush.msra.mxu0 %v78
    %1117 = vmatpush.msra.mxu0 %v75
    %1118 = vmatpush.msra.mxu0 %v72
    %1119 = vmatpush.msra.mxu0 %v69
    %1120 = vmatpush.msra.mxu0 %v66
    %1121 = vmatpush.msra.mxu0 %v63
    %1122 = vmatpush.msra.mxu0 %v60
    %1123 = vmatpush.msra.mxu0 %v57
    %1124 = vmatpush.msra.mxu0 %v54
    %1125 = vmatpush.msra.mxu0 %v51
    %1126 = vmatpush.msra.mxu0 %v48
    %1127 = vmatmul.f32.gmra.mxu0 %v1084
    %v1128 = vpop.f32.mrf.mxu0
    %v1129 = vadd.f32 %v101, %v1128
    %1130 = vdwg.mxu0
    %1131 = vmatpush.msra.mxu0 %v94
    %1132 = vmatpush.msra.mxu0 %v91
    %1133 = vmatpush.msra.mxu0 %v88
    %1134 = vmatpush.msra.mxu0 %v85
    %1135 = vmatpush.msra.mxu0 %v82
    %1136 = vmatpush.msra.mxu0 %v79
    %1137 = vmatpush.msra.mxu0 %v76
    %1138 = vmatpush.msra.mxu0 %v73
    %1139 = vmatpush.msra.mxu0 %v70
    %1140 = vmatpush.msra.mxu0 %v67
    %1141 = vmatpush.msra.mxu0 %v64
    %1142 = vmatpush.msra.mxu0 %v61
    %1143 = vmatpush.msra.mxu0 %v58
    %1144 = vmatpush.msra.mxu0 %v55
    %1145 = vmatpush.msra.mxu0 %v52
    %1146 = vmatpush.msra.mxu0 %v49
    %1147 = vmatmul.f32.gmra.mxu0 %v1084
    %v1148 = vpop.f32.mrf.mxu0
    %v1149 = vadd.f32 %v102, %v1148
    %1150 = vdwg.mxu0
    %v1151 = vadd.f32 %v1088, %v1109
    %v1152 = vadd.f32 %v1089, %v1129
    %v1153 = vmul.f32 %v1151, 0.5
    %v1154 = vmul.f32 %v1152, 0.5
    %v1155 = vtanh.pop %v1153
    %v1156 = vtanh.pop %v1154
    %v1157 = vadd.f32 %v1155, 1.0
    %v1158 = vadd.f32 %v1156, 1.0
    %v1159 = vmul.f32 %v1157, 0.5
    %v1160 = vmul.f32 %v1158, 0.5
    %v1161 = vmul.f32 %v1159, %v1149
    %v1162 = vadd.f32 %v1090, %v1161
    %v1163 = vtanh.pop %v1162
    %v1164 = vsub.f32 1.0, %v1160
    %v1165 = vmul.f32 %v1164, %v1163
    %v1166 = vmul.f32 %v1160, %v1084
    %v1167 = vadd.f32 %v1165, %v1166
    %s1168 = smul.u32 9, 3
    %s1169 = smul.addr %s1168, 8
    %s1170 = scalar_lea.vmem [#allocation2], %s1169
    %v1171 = vld [vmem:[%s1170] sm:$0xff]
    %v1172 = vld [vmem:[%s1170 + $0x8] sm:$0xff]
    %v1173 = vld [vmem:[%s1170 + $0x10] sm:$0xff]
    %1174 = vmatpush.msra.mxu0 %v92
    %1175 = vmatpush.msra.mxu0 %v89
    %1176 = vmatpush.msra.mxu0 %v86
    %1177 = vmatpush.msra.mxu0 %v83
    %1178 = vmatpush.msra.mxu0 %v80
    %1179 = vmatpush.msra.mxu0 %v77
    %1180 = vmatpush.msra.mxu0 %v74
    %1181 = vmatpush.msra.mxu0 %v71
    %1182 = vmatpush.msra.mxu0 %v68
    %1183 = vmatpush.msra.mxu0 %v65
    %1184 = vmatpush.msra.mxu0 %v62
    %1185 = vmatpush.msra.mxu0 %v59
    %1186 = vmatpush.msra.mxu0 %v56
    %1187 = vmatpush.msra.mxu0 %v53
    %1188 = vmatpush.msra.mxu0 %v50
    %1189 = vmatpush.msra.mxu0 %v47
    %1190 = vmatmul.f32.gmra.mxu0 %v1167
    %v1191 = vpop.f32.mrf.mxu0
    %v1192 = vadd.f32 %v100, %v1191
    %1193 = vdwg.mxu0
    %1194 = vmatpush.msra.mxu0 %v93
    %1195 = vmatpush.msra.mxu0 %v90
    %1196 = vmatpush.msra.mxu0 %v87
    %1197 = vmatpush.msra.mxu0 %v84
    %1198 = vmatpush.msra.mxu0 %v81
    %1199 = vmatpush.msra.mxu0 %v78
    %1200 = vmatpush.msra.mxu0 %v75
    %1201 = vmatpush.msra.mxu0 %v72
    %1202 = vmatpush.msra.mxu0 %v69
    %1203 = vmatpush.msra.mxu0 %v66
    %1204 = vmatpush.msra.mxu0 %v63
    %1205 = vmatpush.msra.mxu0 %v60
    %1206 = vmatpush.msra.mxu0 %v57
    %1207 = vmatpush.msra.mxu0 %v54
    %1208 = vmatpush.msra.mxu0 %v51
    %1209 = vmatpush.msra.mxu0 %v48
    %1210 = vmatmul.f32.gmra.mxu0 %v1167
    %v1211 = vpop.f32.mrf.mxu0
    %v1212 = vadd.f32 %v101, %v1211
    %1213 = vdwg.mxu0
    %1214 = vmatpush.msra.mxu0 %v94
    %1215 = vmatpush.msra.mxu0 %v91
    %1216 = vmatpush.msra.mxu0 %v88
    %1217 = vmatpush.msra.mxu0 %v85
    %1218 = vmatpush.msra.mxu0 %v82
    %1219 = vmatpush.msra.mxu0 %v79
    %1220 = vmatpush.msra.mxu0 %v76
    %1221 = vmatpush.msra.mxu0 %v73
    %1222 = vmatpush.msra.mxu0 %v70
    %1223 = vmatpush.msra.mxu0 %v67
    %1224 = vmatpush.msra.mxu0 %v64
    %1225 = vmatpush.msra.mxu0 %v61
    %1226 = vmatpush.msra.mxu0 %v58
    %1227 = vmatpush.msra.mxu0 %v55
    %1228 = vmatpush.msra.mxu0 %v52
    %1229 = vmatpush.msra.mxu0 %v49
    %1230 = vmatmul.f32.gmra.mxu0 %v1167
    %v1231 = vpop.f32.mrf.mxu0
    %v1232 = vadd.f32 %v102, %v1231
    %1233 = vdwg.mxu0
    %v1234 = vadd.f32 %v1171, %v1192
    %v1235 = vadd.f32 %v1172, %v1212
    %v1236 = vmul.f32 %v1234, 0.5
    %v1237 = vmul.f32 %v1235, 0.5
    %v1238 = vtanh.pop %v1236
    %v1239 = vtanh.pop %v1237
    %v1240 = vadd.f32 %v1238, 1.0
    %v1241 = vadd.f32 %v1239, 1.0
    %v1242 = vmul.f32 %v1240, 0.5
    %v1243 = vmul.f32 %v1241, 0.5
    %v1244 = vmul.f32 %v1242, %v1232
    %v1245 = vadd.f32 %v1173, %v1244
    %v1246 = vtanh.pop %v1245
    %v1247 = vsub.f32 1.0, %v1243
    %v1248 = vmul.f32 %v1247, %v1246
    %v1249 = vmul.f32 %v1243, %v1167
    %v1250 = vadd.f32 %v1248, %v1249
    %s1251 = smul.u32 10, 3
    %s1252 = smul.addr %s1251, 8
    %s1253 = scalar_lea.vmem [#allocation2], %s1252
    %v1254 = vld [vmem:[%s1253] sm:$0xff]
    %v1255 = vld [vmem:[%s1253 + $0x8] sm:$0xff]
    %v1256 = vld [vmem:[%s1253 + $0x10] sm:$0xff]
    %1257 = vmatpush.msra.mxu0 %v92
    %1258 = vmatpush.msra.mxu0 %v89
    %1259 = vmatpush.msra.mxu0 %v86
    %1260 = vmatpush.msra.mxu0 %v83
    %1261 = vmatpush.msra.mxu0 %v80
    %1262 = vmatpush.msra.mxu0 %v77
    %1263 = vmatpush.msra.mxu0 %v74
    %1264 = vmatpush.msra.mxu0 %v71
    %1265 = vmatpush.msra.mxu0 %v68
    %1266 = vmatpush.msra.mxu0 %v65
    %1267 = vmatpush.msra.mxu0 %v62
    %1268 = vmatpush.msra.mxu0 %v59
    %1269 = vmatpush.msra.mxu0 %v56
    %1270 = vmatpush.msra.mxu0 %v53
    %1271 = vmatpush.msra.mxu0 %v50
    %1272 = vmatpush.msra.mxu0 %v47
    %1273 = vmatmul.f32.gmra.mxu0 %v1250
    %v1274 = vpop.f32.mrf.mxu0
    %v1275 = vadd.f32 %v100, %v1274
    %1276 = vdwg.mxu0
    %1277 = vmatpush.msra.mxu0 %v93
    %1278 = vmatpush.msra.mxu0 %v90
    %1279 = vmatpush.msra.mxu0 %v87
    %1280 = vmatpush.msra.mxu0 %v84
    %1281 = vmatpush.msra.mxu0 %v81
    %1282 = vmatpush.msra.mxu0 %v78
    %1283 = vmatpush.msra.mxu0 %v75
    %1284 = vmatpush.msra.mxu0 %v72
    %1285 = vmatpush.msra.mxu0 %v69
    %1286 = vmatpush.msra.mxu0 %v66
    %1287 = vmatpush.msra.mxu0 %v63
    %1288 = vmatpush.msra.mxu0 %v60
    %1289 = vmatpush.msra.mxu0 %v57
    %1290 = vmatpush.msra.mxu0 %v54
    %1291 = vmatpush.msra.mxu0 %v51
    %1292 = vmatpush.msra.mxu0 %v48
    %1293 = vmatmul.f32.gmra.mxu0 %v1250
    %v1294 = vpop.f32.mrf.mxu0
    %v1295 = vadd.f32 %v101, %v1294
    %1296 = vdwg.mxu0
    %1297 = vmatpush.msra.mxu0 %v94
    %1298 = vmatpush.msra.mxu0 %v91
    %1299 = vmatpush.msra.mxu0 %v88
    %1300 = vmatpush.msra.mxu0 %v85
    %1301 = vmatpush.msra.mxu0 %v82
    %1302 = vmatpush.msra.mxu0 %v79
    %1303 = vmatpush.msra.mxu0 %v76
    %1304 = vmatpush.msra.mxu0 %v73
    %1305 = vmatpush.msra.mxu0 %v70
    %1306 = vmatpush.msra.mxu0 %v67
    %1307 = vmatpush.msra.mxu0 %v64
    %1308 = vmatpush.msra.mxu0 %v61
    %1309 = vmatpush.msra.mxu0 %v58
    %1310 = vmatpush.msra.mxu0 %v55
    %1311 = vmatpush.msra.mxu0 %v52
    %1312 = vmatpush.msra.mxu0 %v49
    %1313 = vmatmul.f32.gmra.mxu0 %v1250
    %v1314 = vpop.f32.mrf.mxu0
    %v1315 = vadd.f32 %v102, %v1314
    %1316 = vdwg.mxu0
    %v1317 = vadd.f32 %v1254, %v1275
    %v1318 = vadd.f32 %v1255, %v1295
    %v1319 = vmul.f32 %v1317, 0.5
    %v1320 = vmul.f32 %v1318, 0.5
    %v1321 = vtanh.pop %v1319
    %v1322 = vtanh.pop %v1320
    %v1323 = vadd.f32 %v1321, 1.0
    %v1324 = vadd.f32 %v1322, 1.0
    %v1325 = vmul.f32 %v1323, 0.5
    %v1326 = vmul.f32 %v1324, 0.5
    %v1327 = vmul.f32 %v1325, %v1315
    %v1328 = vadd.f32 %v1256, %v1327
    %v1329 = vtanh.pop %v1328
    %v1330 = vsub.f32 1.0, %v1326
    %v1331 = vmul.f32 %v1330, %v1329
    %v1332 = vmul.f32 %v1326, %v1250
    %v1333 = vadd.f32 %v1331, %v1332
    %s1334 = smul.u32 11, 3
    %s1335 = smul.addr %s1334, 8
    %s1336 = scalar_lea.vmem [#allocation2], %s1335
    %v1337 = vld [vmem:[%s1336] sm:$0xff]
    %v1338 = vld [vmem:[%s1336 + $0x8] sm:$0xff]
    %v1339 = vld [vmem:[%s1336 + $0x10] sm:$0xff]
    %1340 = vmatpush.msra.mxu0 %v92
    %1341 = vmatpush.msra.mxu0 %v89
    %1342 = vmatpush.msra.mxu0 %v86
    %1343 = vmatpush.msra.mxu0 %v83
    %1344 = vmatpush.msra.mxu0 %v80
    %1345 = vmatpush.msra.mxu0 %v77
    %1346 = vmatpush.msra.mxu0 %v74
    %1347 = vmatpush.msra.mxu0 %v71
    %1348 = vmatpush.msra.mxu0 %v68
    %1349 = vmatpush.msra.mxu0 %v65
    %1350 = vmatpush.msra.mxu0 %v62
    %1351 = vmatpush.msra.mxu0 %v59
    %1352 = vmatpush.msra.mxu0 %v56
    %1353 = vmatpush.msra.mxu0 %v53
    %1354 = vmatpush.msra.mxu0 %v50
    %1355 = vmatpush.msra.mxu0 %v47
    %1356 = vmatmul.f32.gmra.mxu0 %v1333
    %v1357 = vpop.f32.mrf.mxu0
    %v1358 = vadd.f32 %v100, %v1357
    %1359 = vdwg.mxu0
    %1360 = vmatpush.msra.mxu0 %v93
    %1361 = vmatpush.msra.mxu0 %v90
    %1362 = vmatpush.msra.mxu0 %v87
    %1363 = vmatpush.msra.mxu0 %v84
    %1364 = vmatpush.msra.mxu0 %v81
    %1365 = vmatpush.msra.mxu0 %v78
    %1366 = vmatpush.msra.mxu0 %v75
    %1367 = vmatpush.msra.mxu0 %v72
    %1368 = vmatpush.msra.mxu0 %v69
    %1369 = vmatpush.msra.mxu0 %v66
    %1370 = vmatpush.msra.mxu0 %v63
    %1371 = vmatpush.msra.mxu0 %v60
    %1372 = vmatpush.msra.mxu0 %v57
    %1373 = vmatpush.msra.mxu0 %v54
    %1374 = vmatpush.msra.mxu0 %v51
    %1375 = vmatpush.msra.mxu0 %v48
    %1376 = vmatmul.f32.gmra.mxu0 %v1333
    %v1377 = vpop.f32.mrf.mxu0
    %v1378 = vadd.f32 %v101, %v1377
    %1379 = vdwg.mxu0
    %1380 = vmatpush.msra.mxu0 %v94
    %1381 = vmatpush.msra.mxu0 %v91
    %1382 = vmatpush.msra.mxu0 %v88
    %1383 = vmatpush.msra.mxu0 %v85
    %1384 = vmatpush.msra.mxu0 %v82
    %1385 = vmatpush.msra.mxu0 %v79
    %1386 = vmatpush.msra.mxu0 %v76
    %1387 = vmatpush.msra.mxu0 %v73
    %1388 = vmatpush.msra.mxu0 %v70
    %1389 = vmatpush.msra.mxu0 %v67
    %1390 = vmatpush.msra.mxu0 %v64
    %1391 = vmatpush.msra.mxu0 %v61
    %1392 = vmatpush.msra.mxu0 %v58
    %1393 = vmatpush.msra.mxu0 %v55
    %1394 = vmatpush.msra.mxu0 %v52
    %1395 = vmatpush.msra.mxu0 %v49
    %1396 = vmatmul.f32.gmra.mxu0 %v1333
    %v1397 = vpop.f32.mrf.mxu0
    %v1398 = vadd.f32 %v102, %v1397
    %1399 = vdwg.mxu0
    %v1400 = vadd.f32 %v1337, %v1358
    %v1401 = vadd.f32 %v1338, %v1378
    %v1402 = vmul.f32 %v1400, 0.5
    %v1403 = vmul.f32 %v1401, 0.5
    %v1404 = vtanh.pop %v1402
    %v1405 = vtanh.pop %v1403
    %v1406 = vadd.f32 %v1404, 1.0
    %v1407 = vadd.f32 %v1405, 1.0
    %v1408 = vmul.f32 %v1406, 0.5
    %v1409 = vmul.f32 %v1407, 0.5
    %v1410 = vmul.f32 %v1408, %v1398
    %v1411 = vadd.f32 %v1339, %v1410
    %v1412 = vtanh.pop %v1411
    %v1413 = vsub.f32 1.0, %v1409
    %v1414 = vmul.f32 %v1413, %v1412
    %v1415 = vmul.f32 %v1409, %v1333
    %v1416 = vadd.f32 %v1414, %v1415
    %s1417 = smul.u32 12, 3
    %s1418 = smul.addr %s1417, 8
    %s1419 = scalar_lea.vmem [#allocation2], %s1418
    %v1420 = vld [vmem:[%s1419] sm:$0xff]
    %v1421 = vld [vmem:[%s1419 + $0x8] sm:$0xff]
    %v1422 = vld [vmem:[%s1419 + $0x10] sm:$0xff]
    %1423 = vmatpush.msra.mxu0 %v92
    %1424 = vmatpush.msra.mxu0 %v89
    %1425 = vmatpush.msra.mxu0 %v86
    %1426 = vmatpush.msra.mxu0 %v83
    %1427 = vmatpush.msra.mxu0 %v80
    %1428 = vmatpush.msra.mxu0 %v77
    %1429 = vmatpush.msra.mxu0 %v74
    %1430 = vmatpush.msra.mxu0 %v71
    %1431 = vmatpush.msra.mxu0 %v68
    %1432 = vmatpush.msra.mxu0 %v65
    %1433 = vmatpush.msra.mxu0 %v62
    %1434 = vmatpush.msra.mxu0 %v59
    %1435 = vmatpush.msra.mxu0 %v56
    %1436 = vmatpush.msra.mxu0 %v53
    %1437 = vmatpush.msra.mxu0 %v50
    %1438 = vmatpush.msra.mxu0 %v47
    %1439 = vmatmul.f32.gmra.mxu0 %v1416
    %v1440 = vpop.f32.mrf.mxu0
    %v1441 = vadd.f32 %v100, %v1440
    %1442 = vdwg.mxu0
    %1443 = vmatpush.msra.mxu0 %v93
    %1444 = vmatpush.msra.mxu0 %v90
    %1445 = vmatpush.msra.mxu0 %v87
    %1446 = vmatpush.msra.mxu0 %v84
    %1447 = vmatpush.msra.mxu0 %v81
    %1448 = vmatpush.msra.mxu0 %v78
    %1449 = vmatpush.msra.mxu0 %v75
    %1450 = vmatpush.msra.mxu0 %v72
    %1451 = vmatpush.msra.mxu0 %v69
    %1452 = vmatpush.msra.mxu0 %v66
    %1453 = vmatpush.msra.mxu0 %v63
    %1454 = vmatpush.msra.mxu0 %v60
    %1455 = vmatpush.msra.mxu0 %v57
    %1456 = vmatpush.msra.mxu0 %v54
    %1457 = vmatpush.msra.mxu0 %v51
    %1458 = vmatpush.msra.mxu0 %v48
    %1459 = vmatmul.f32.gmra.mxu0 %v1416
    %v1460 = vpop.f32.mrf.mxu0
    %v1461 = vadd.f32 %v101, %v1460
    %1462 = vdwg.mxu0
    %1463 = vmatpush.msra.mxu0 %v94
    %1464 = vmatpush.msra.mxu0 %v91
    %1465 = vmatpush.msra.mxu0 %v88
    %1466 = vmatpush.msra.mxu0 %v85
    %1467 = vmatpush.msra.mxu0 %v82
    %1468 = vmatpush.msra.mxu0 %v79
    %1469 = vmatpush.msra.mxu0 %v76
    %1470 = vmatpush.msra.mxu0 %v73
    %1471 = vmatpush.msra.mxu0 %v70
    %1472 = vmatpush.msra.mxu0 %v67
    %1473 = vmatpush.msra.mxu0 %v64
    %1474 = vmatpush.msra.mxu0 %v61
    %1475 = vmatpush.msra.mxu0 %v58
    %1476 = vmatpush.msra.mxu0 %v55
    %1477 = vmatpush.msra.mxu0 %v52
    %1478 = vmatpush.msra.mxu0 %v49
    %1479 = vmatmul.f32.gmra.mxu0 %v1416
    %v1480 = vpop.f32.mrf.mxu0
    %v1481 = vadd.f32 %v102, %v1480
    %1482 = vdwg.mxu0
    %v1483 = vadd.f32 %v1420, %v1441
    %v1484 = vadd.f32 %v1421, %v1461
    %v1485 = vmul.f32 %v1483, 0.5
    %v1486 = vmul.f32 %v1484, 0.5
    %v1487 = vtanh.pop %v1485
    %v1488 = vtanh.pop %v1486
    %v1489 = vadd.f32 %v1487, 1.0
    %v1490 = vadd.f32 %v1488, 1.0
    %v1491 = vmul.f32 %v1489, 0.5
    %v1492 = vmul.f32 %v1490, 0.5
    %v1493 = vmul.f32 %v1491, %v1481
    %v1494 = vadd.f32 %v1422, %v1493
    %v1495 = vtanh.pop %v1494
    %v1496 = vsub.f32 1.0, %v1492
    %v1497 = vmul.f32 %v1496, %v1495
    %v1498 = vmul.f32 %v1492, %v1416
    %v1499 = vadd.f32 %v1497, %v1498
    %s1500 = smul.u32 13, 3
    %s1501 = smul.addr %s1500, 8
    %s1502 = scalar_lea.vmem [#allocation2], %s1501
    %v1503 = vld [vmem:[%s1502] sm:$0xff]
    %v1504 = vld [vmem:[%s1502 + $0x8] sm:$0xff]
    %v1505 = vld [vmem:[%s1502 + $0x10] sm:$0xff]
    %1506 = vmatpush.msra.mxu0 %v92
    %1507 = vmatpush.msra.mxu0 %v89
    %1508 = vmatpush.msra.mxu0 %v86
    %1509 = vmatpush.msra.mxu0 %v83
    %1510 = vmatpush.msra.mxu0 %v80
    %1511 = vmatpush.msra.mxu0 %v77
    %1512 = vmatpush.msra.mxu0 %v74
    %1513 = vmatpush.msra.mxu0 %v71
    %1514 = vmatpush.msra.mxu0 %v68
    %1515 = vmatpush.msra.mxu0 %v65
    %1516 = vmatpush.msra.mxu0 %v62
    %1517 = vmatpush.msra.mxu0 %v59
    %1518 = vmatpush.msra.mxu0 %v56
    %1519 = vmatpush.msra.mxu0 %v53
    %1520 = vmatpush.msra.mxu0 %v50
    %1521 = vmatpush.msra.mxu0 %v47
    %1522 = vmatmul.f32.gmra.mxu0 %v1499
    %v1523 = vpop.f32.mrf.mxu0
    %v1524 = vadd.f32 %v100, %v1523
    %1525 = vdwg.mxu0
    %1526 = vmatpush.msra.mxu0 %v93
    %1527 = vmatpush.msra.mxu0 %v90
    %1528 = vmatpush.msra.mxu0 %v87
    %1529 = vmatpush.msra.mxu0 %v84
    %1530 = vmatpush.msra.mxu0 %v81
    %1531 = vmatpush.msra.mxu0 %v78
    %1532 = vmatpush.msra.mxu0 %v75
    %1533 = vmatpush.msra.mxu0 %v72
    %1534 = vmatpush.msra.mxu0 %v69
    %1535 = vmatpush.msra.mxu0 %v66
    %1536 = vmatpush.msra.mxu0 %v63
    %1537 = vmatpush.msra.mxu0 %v60
    %1538 = vmatpush.msra.mxu0 %v57
    %1539 = vmatpush.msra.mxu0 %v54
    %1540 = vmatpush.msra.mxu0 %v51
    %1541 = vmatpush.msra.mxu0 %v48
    %1542 = vmatmul.f32.gmra.mxu0 %v1499
    %v1543 = vpop.f32.mrf.mxu0
    %v1544 = vadd.f32 %v101, %v1543
    %1545 = vdwg.mxu0
    %1546 = vmatpush.msra.mxu0 %v94
    %1547 = vmatpush.msra.mxu0 %v91
    %1548 = vmatpush.msra.mxu0 %v88
    %1549 = vmatpush.msra.mxu0 %v85
    %1550 = vmatpush.msra.mxu0 %v82
    %1551 = vmatpush.msra.mxu0 %v79
    %1552 = vmatpush.msra.mxu0 %v76
    %1553 = vmatpush.msra.mxu0 %v73
    %1554 = vmatpush.msra.mxu0 %v70
    %1555 = vmatpush.msra.mxu0 %v67
    %1556 = vmatpush.msra.mxu0 %v64
    %1557 = vmatpush.msra.mxu0 %v61
    %1558 = vmatpush.msra.mxu0 %v58
    %1559 = vmatpush.msra.mxu0 %v55
    %1560 = vmatpush.msra.mxu0 %v52
    %1561 = vmatpush.msra.mxu0 %v49
    %1562 = vmatmul.f32.gmra.mxu0 %v1499
    %v1563 = vpop.f32.mrf.mxu0
    %v1564 = vadd.f32 %v102, %v1563
    %1565 = vdwg.mxu0
    %v1566 = vadd.f32 %v1503, %v1524
    %v1567 = vadd.f32 %v1504, %v1544
    %v1568 = vmul.f32 %v1566, 0.5
    %v1569 = vmul.f32 %v1567, 0.5
    %v1570 = vtanh.pop %v1568
    %v1571 = vtanh.pop %v1569
    %v1572 = vadd.f32 %v1570, 1.0
    %v1573 = vadd.f32 %v1571, 1.0
    %v1574 = vmul.f32 %v1572, 0.5
    %v1575 = vmul.f32 %v1573, 0.5
    %v1576 = vmul.f32 %v1574, %v1564
    %v1577 = vadd.f32 %v1505, %v1576
    %v1578 = vtanh.pop %v1577
    %v1579 = vsub.f32 1.0, %v1575
    %v1580 = vmul.f32 %v1579, %v1578
    %v1581 = vmul.f32 %v1575, %v1499
    %v1582 = vadd.f32 %v1580, %v1581
    %s1583 = smul.u32 14, 3
    %s1584 = smul.addr %s1583, 8
    %s1585 = scalar_lea.vmem [#allocation2], %s1584
    %v1586 = vld [vmem:[%s1585] sm:$0xff]
    %v1587 = vld [vmem:[%s1585 + $0x8] sm:$0xff]
    %v1588 = vld [vmem:[%s1585 + $0x10] sm:$0xff]
    %1589 = vmatpush.msra.mxu0 %v92
    %1590 = vmatpush.msra.mxu0 %v89
    %1591 = vmatpush.msra.mxu0 %v86
    %1592 = vmatpush.msra.mxu0 %v83
    %1593 = vmatpush.msra.mxu0 %v80
    %1594 = vmatpush.msra.mxu0 %v77
    %1595 = vmatpush.msra.mxu0 %v74
    %1596 = vmatpush.msra.mxu0 %v71
    %1597 = vmatpush.msra.mxu0 %v68
    %1598 = vmatpush.msra.mxu0 %v65
    %1599 = vmatpush.msra.mxu0 %v62
    %1600 = vmatpush.msra.mxu0 %v59
    %1601 = vmatpush.msra.mxu0 %v56
    %1602 = vmatpush.msra.mxu0 %v53
    %1603 = vmatpush.msra.mxu0 %v50
    %1604 = vmatpush.msra.mxu0 %v47
    %1605 = vmatmul.f32.gmra.mxu0 %v1582
    %v1606 = vpop.f32.mrf.mxu0
    %v1607 = vadd.f32 %v100, %v1606
    %1608 = vdwg.mxu0
    %1609 = vmatpush.msra.mxu0 %v93
    %1610 = vmatpush.msra.mxu0 %v90
    %1611 = vmatpush.msra.mxu0 %v87
    %1612 = vmatpush.msra.mxu0 %v84
    %1613 = vmatpush.msra.mxu0 %v81
    %1614 = vmatpush.msra.mxu0 %v78
    %1615 = vmatpush.msra.mxu0 %v75
    %1616 = vmatpush.msra.mxu0 %v72
    %1617 = vmatpush.msra.mxu0 %v69
    %1618 = vmatpush.msra.mxu0 %v66
    %1619 = vmatpush.msra.mxu0 %v63
    %1620 = vmatpush.msra.mxu0 %v60
    %1621 = vmatpush.msra.mxu0 %v57
    %1622 = vmatpush.msra.mxu0 %v54
    %1623 = vmatpush.msra.mxu0 %v51
    %1624 = vmatpush.msra.mxu0 %v48
    %1625 = vmatmul.f32.gmra.mxu0 %v1582
    %v1626 = vpop.f32.mrf.mxu0
    %v1627 = vadd.f32 %v101, %v1626
    %1628 = vdwg.mxu0
    %1629 = vmatpush.msra.mxu0 %v94
    %1630 = vmatpush.msra.mxu0 %v91
    %1631 = vmatpush.msra.mxu0 %v88
    %1632 = vmatpush.msra.mxu0 %v85
    %1633 = vmatpush.msra.mxu0 %v82
    %1634 = vmatpush.msra.mxu0 %v79
    %1635 = vmatpush.msra.mxu0 %v76
    %1636 = vmatpush.msra.mxu0 %v73
    %1637 = vmatpush.msra.mxu0 %v70
    %1638 = vmatpush.msra.mxu0 %v67
    %1639 = vmatpush.msra.mxu0 %v64
    %1640 = vmatpush.msra.mxu0 %v61
    %1641 = vmatpush.msra.mxu0 %v58
    %1642 = vmatpush.msra.mxu0 %v55
    %1643 = vmatpush.msra.mxu0 %v52
    %1644 = vmatpush.msra.mxu0 %v49
    %1645 = vmatmul.f32.gmra.mxu0 %v1582
    %v1646 = vpop.f32.mrf.mxu0
    %v1647 = vadd.f32 %v102, %v1646
    %1648 = vdwg.mxu0
    %v1649 = vadd.f32 %v1586, %v1607
    %v1650 = vadd.f32 %v1587, %v1627
    %v1651 = vmul.f32 %v1649, 0.5
    %v1652 = vmul.f32 %v1650, 0.5
    %v1653 = vtanh.pop %v1651
    %v1654 = vtanh.pop %v1652
    %v1655 = vadd.f32 %v1653, 1.0
    %v1656 = vadd.f32 %v1654, 1.0
    %v1657 = vmul.f32 %v1655, 0.5
    %v1658 = vmul.f32 %v1656, 0.5
    %v1659 = vmul.f32 %v1657, %v1647
    %v1660 = vadd.f32 %v1588, %v1659
    %v1661 = vtanh.pop %v1660
    %v1662 = vsub.f32 1.0, %v1658
    %v1663 = vmul.f32 %v1662, %v1661
    %v1664 = vmul.f32 %v1658, %v1582
    %v1665 = vadd.f32 %v1663, %v1664
    %s1666 = smul.u32 15, 3
    %s1667 = smul.addr %s1666, 8
    %s1668 = scalar_lea.vmem [#allocation2], %s1667
    %v1669 = vld [vmem:[%s1668] sm:$0xff]
    %v1670 = vld [vmem:[%s1668 + $0x8] sm:$0xff]
    %v1671 = vld [vmem:[%s1668 + $0x10] sm:$0xff]
    %1672 = vmatpush.msra.mxu0 %v92
    %1673 = vmatpush.msra.mxu0 %v89
    %1674 = vmatpush.msra.mxu0 %v86
    %1675 = vmatpush.msra.mxu0 %v83
    %1676 = vmatpush.msra.mxu0 %v80
    %1677 = vmatpush.msra.mxu0 %v77
    %1678 = vmatpush.msra.mxu0 %v74
    %1679 = vmatpush.msra.mxu0 %v71
    %1680 = vmatpush.msra.mxu0 %v68
    %1681 = vmatpush.msra.mxu0 %v65
    %1682 = vmatpush.msra.mxu0 %v62
    %1683 = vmatpush.msra.mxu0 %v59
    %1684 = vmatpush.msra.mxu0 %v56
    %1685 = vmatpush.msra.mxu0 %v53
    %1686 = vmatpush.msra.mxu0 %v50
    %1687 = vmatpush.msra.mxu0 %v47
    %1688 = vmatmul.f32.gmra.mxu0 %v1665
    %v1689 = vpop.f32.mrf.mxu0
    %v1690 = vadd.f32 %v100, %v1689
    %1691 = vdwg.mxu0
    %1692 = vmatpush.msra.mxu0 %v93
    %1693 = vmatpush.msra.mxu0 %v90
    %1694 = vmatpush.msra.mxu0 %v87
    %1695 = vmatpush.msra.mxu0 %v84
    %1696 = vmatpush.msra.mxu0 %v81
    %1697 = vmatpush.msra.mxu0 %v78
    %1698 = vmatpush.msra.mxu0 %v75
    %1699 = vmatpush.msra.mxu0 %v72
    %1700 = vmatpush.msra.mxu0 %v69
    %1701 = vmatpush.msra.mxu0 %v66
    %1702 = vmatpush.msra.mxu0 %v63
    %1703 = vmatpush.msra.mxu0 %v60
    %1704 = vmatpush.msra.mxu0 %v57
    %1705 = vmatpush.msra.mxu0 %v54
    %1706 = vmatpush.msra.mxu0 %v51
    %1707 = vmatpush.msra.mxu0 %v48
    %1708 = vmatmul.f32.gmra.mxu0 %v1665
    %v1709 = vpop.f32.mrf.mxu0
    %v1710 = vadd.f32 %v101, %v1709
    %1711 = vdwg.mxu0
    %1712 = vmatpush.msra.mxu0 %v94
    %1713 = vmatpush.msra.mxu0 %v91
    %1714 = vmatpush.msra.mxu0 %v88
    %1715 = vmatpush.msra.mxu0 %v85
    %1716 = vmatpush.msra.mxu0 %v82
    %1717 = vmatpush.msra.mxu0 %v79
    %1718 = vmatpush.msra.mxu0 %v76
    %1719 = vmatpush.msra.mxu0 %v73
    %1720 = vmatpush.msra.mxu0 %v70
    %1721 = vmatpush.msra.mxu0 %v67
    %1722 = vmatpush.msra.mxu0 %v64
    %1723 = vmatpush.msra.mxu0 %v61
    %1724 = vmatpush.msra.mxu0 %v58
    %1725 = vmatpush.msra.mxu0 %v55
    %1726 = vmatpush.msra.mxu0 %v52
    %1727 = vmatpush.msra.mxu0 %v49
    %1728 = vmatmul.f32.gmra.mxu0 %v1665
    %v1729 = vpop.f32.mrf.mxu0
    %v1730 = vadd.f32 %v102, %v1729
    %1731 = vdwg.mxu0
    %v1732 = vadd.f32 %v1669, %v1690
    %v1733 = vadd.f32 %v1670, %v1710
    %v1734 = vmul.f32 %v1732, 0.5
    %v1735 = vmul.f32 %v1733, 0.5
    %v1736 = vtanh.pop %v1734
    %v1737 = vtanh.pop %v1735
    %v1738 = vadd.f32 %v1736, 1.0
    %v1739 = vadd.f32 %v1737, 1.0
    %v1740 = vmul.f32 %v1738, 0.5
    %v1741 = vmul.f32 %v1739, 0.5
    %v1742 = vmul.f32 %v1740, %v1730
    %v1743 = vadd.f32 %v1671, %v1742
    %v1744 = vtanh.pop %v1743
    %v1745 = vsub.f32 1.0, %v1741
    %v1746 = vmul.f32 %v1745, %v1744
    %v1747 = vmul.f32 %v1741, %v1665
    %v1748 = vadd.f32 %v1746, %v1747
    %s1749 = smul.u32 8, 51
    %s1750 = smul.u32 %s1749, 2
    %s1751 = sshll.u32 %s1750, 4
    %1752 = dma.done [#allocation4], %s1751
    %v1753 = vld [vmem:[#allocation3] sm:$0xff]
    %v1754 = vld [vmem:[#allocation3 + $0x10] sm:$0xff]
    %v1755 = vld [vmem:[#allocation3 + $0x20] sm:$0xff]
    %v1756 = vld [vmem:[#allocation3 + $0x30] sm:$0xff]
    %v1757 = vld [vmem:[#allocation3 + $0x40] sm:$0xff]
    %v1758 = vld [vmem:[#allocation3 + $0x50] sm:$0xff]
    %v1759 = vld [vmem:[#allocation3 + $0x60] sm:$0xff]
    %v1760 = vld [vmem:[#allocation3 + $0x70] sm:$0xff]
    %v1761 = vld [vmem:[#allocation3 + $0x80] sm:$0xff]
    %v1762 = vld [vmem:[#allocation3 + $0x90] sm:$0xff]
    %v1763 = vld [vmem:[#allocation3 + $0xa0] sm:$0xff]
    %v1764 = vld [vmem:[#allocation3 + $0xb0] sm:$0xff]
    %v1765 = vld [vmem:[#allocation3 + $0xc0] sm:$0xff]
    %v1766 = vld [vmem:[#allocation3 + $0xd0] sm:$0xff]
    %v1767 = vld [vmem:[#allocation3 + $0xe0] sm:$0xff]
    %v1768 = vld [vmem:[#allocation3 + $0xf0] sm:$0xff]
    %v1769 = vld [vmem:[#allocation3 + $0x100] ss:$0 sm:$0xff]
    %v1770 = vld [vmem:[#allocation3 + $0x110] sm:$0xff]
    %v1771 = vld [vmem:[#allocation3 + $0x120] sm:$0xff]
    %v1772 = vld [vmem:[#allocation3 + $0x130] sm:$0xff]
    %v1773 = vld [vmem:[#allocation3 + $0x140] sm:$0xff]
    %v1774 = vld [vmem:[#allocation3 + $0x150] sm:$0xff]
    %v1775 = vld [vmem:[#allocation3 + $0x160] sm:$0xff]
    %v1776 = vld [vmem:[#allocation3 + $0x170] sm:$0xff]
    %v1777 = vld [vmem:[#allocation3 + $0x180] sm:$0xff]
    %v1778 = vld [vmem:[#allocation3 + $0x190] sm:$0xff]
    %v1779 = vld [vmem:[#allocation3 + $0x1a0] sm:$0xff]
    %v1780 = vld [vmem:[#allocation3 + $0x1b0] sm:$0xff]
    %v1781 = vld [vmem:[#allocation3 + $0x1c0] sm:$0xff]
    %v1782 = vld [vmem:[#allocation3 + $0x1d0] sm:$0xff]
    %v1783 = vld [vmem:[#allocation3 + $0x1e0] sm:$0xff]
    %v1784 = vld [vmem:[#allocation3 + $0x1f0] sm:$0xff]
    %v1785 = vld [vmem:[#allocation3 + $0x200] sm:$0xff]
    %v1786 = vld [vmem:[#allocation3 + $0x210] ss:$0 sm:$0xff]
    %v1787 = vld [vmem:[#allocation3 + $0x220] sm:$0xff]
    %v1788 = vld [vmem:[#allocation3 + $0x228] sm:$0xff]
    %v1789 = vld [vmem:[#allocation3 + $0x230] sm:$0xff]
    %v1790 = vld [vmem:[#allocation3 + $0x238] sm:$0xff]
    %v1791 = vld [vmem:[#allocation3 + $0x240] sm:$0xff]
    %v1792 = vld [vmem:[#allocation3 + $0x248] sm:$0xff]
    %v1793 = vld [vmem:[#allocation3 + $0x250] sm:$0xff]
    %v1794 = vld [vmem:[#allocation3 + $0x258] sm:$0xff]
    %v1795 = vld [vmem:[#allocation3 + $0x260] sm:$0xff]
    %v1796 = vld [vmem:[#allocation3 + $0x268] sm:$0xff]
    %v1797 = vld [vmem:[#allocation3 + $0x270] sm:$0xff]
    %v1798 = vld [vmem:[#allocation3 + $0x278] sm:$0xff]
    %v1799 = vld [vmem:[#allocation3 + $0x280] sm:$0xff]
    %v1800 = vld [vmem:[#allocation3 + $0x288] sm:$0xff]
    %v1801 = vld [vmem:[#allocation3 + $0x290] sm:$0xff]
    %v1802 = vld [vmem:[#allocation3 + $0x298] sm:$0xff]
    %v1803 = vld [vmem:[#allocation3 + $0x2a0] sm:$0xff]
    %v1804 = vld [vmem:[#allocation3 + $0x2a8] sm:$0xff]
    %v1805 = vld [vmem:[#allocation3 + $0x2b0] sm:$0xff]
    %v1806 = vld [vmem:[#allocation3 + $0x2b8] sm:$0xff]
    %v1807 = vld [vmem:[#allocation3 + $0x2c0] sm:$0xff]
    %v1808 = vld [vmem:[#allocation3 + $0x2c8] sm:$0xff]
    %v1809 = vld [vmem:[#allocation3 + $0x2d0] sm:$0xff]
    %v1810 = vld [vmem:[#allocation3 + $0x2d8] sm:$0xff]
    %v1811 = vld [vmem:[#allocation3 + $0x2e0] sm:$0xff]
    %v1812 = vld [vmem:[#allocation3 + $0x2e8] sm:$0xff]
    %v1813 = vld [vmem:[#allocation3 + $0x2f0] sm:$0xff]
    %v1814 = vld [vmem:[#allocation3 + $0x2f8] sm:$0xff]
    %v1815 = vld [vmem:[#allocation3 + $0x300] sm:$0xff]
    %v1816 = vld [vmem:[#allocation3 + $0x308] sm:$0xff]
    %v1817 = vld [vmem:[#allocation3 + $0x310] sm:$0xff]
    %v1818 = vld [vmem:[#allocation3 + $0x318] sm:$0xff]
    %s1819 = scalar_lea.vmem [#allocation3], 800
    %v1820 = vld [vmem:[%s1819] ss:$8 sm:$0x3]
    %1821 = vmatpush.msra.mxu0 %v1768
    %1822 = vmatpush.msra.mxu0 %v1767
    %1823 = vmatpush.msra.mxu0 %v1766
    %1824 = vmatpush.msra.mxu0 %v1765
    %1825 = vmatpush.msra.mxu0 %v1764
    %1826 = vmatpush.msra.mxu0 %v1763
    %1827 = vmatpush.msra.mxu0 %v1762
    %1828 = vmatpush.msra.mxu0 %v1761
    %1829 = vmatpush.msra.mxu0 %v1760
    %1830 = vmatpush.msra.mxu0 %v1759
    %1831 = vmatpush.msra.mxu0 %v1758
    %1832 = vmatpush.msra.mxu0 %v1757
    %1833 = vmatpush.msra.mxu0 %v1756
    %1834 = vmatpush.msra.mxu0 %v1755
    %1835 = vmatpush.msra.mxu0 %v1754
    %1836 = vmatpush.msra.mxu0 %v1753
    %1837 = vmatmul.f32.gmra.mxu0 %v1748
    %v1838 = vpop.f32.mrf.mxu0
    %v1839 = vadd.f32 %v1769, %v1838
    %1840 = vdwg.mxu0
    %v1841 = vtanh.pop %v1839
    %1842 = vmatpush.msra.mxu0 %v1785
    %1843 = vmatpush.msra.mxu0 %v1784
    %1844 = vmatpush.msra.mxu0 %v1783
    %1845 = vmatpush.msra.mxu0 %v1782
    %1846 = vmatpush.msra.mxu0 %v1781
    %1847 = vmatpush.msra.mxu0 %v1780
    %1848 = vmatpush.msra.mxu0 %v1779
    %1849 = vmatpush.msra.mxu0 %v1778
    %1850 = vmatpush.msra.mxu0 %v1777
    %1851 = vmatpush.msra.mxu0 %v1776
    %1852 = vmatpush.msra.mxu0 %v1775
    %1853 = vmatpush.msra.mxu0 %v1774
    %1854 = vmatpush.msra.mxu0 %v1773
    %1855 = vmatpush.msra.mxu0 %v1772
    %1856 = vmatpush.msra.mxu0 %v1771
    %1857 = vmatpush.msra.mxu0 %v1770
    %1858 = vmatmul.f32.gmra.mxu0 %v1841
    %v1859 = vpop.f32.mrf.mxu0
    %v1860 = vadd.f32 %v1786, %v1859
    %1861 = vdwg.mxu0
    %v1862 = vtanh.pop %v1860
    %v1864 = vperm.slane %v1820, 0
    %v1865 = vperm.slane %v1820, 1
    %1868 = vmatpush.msra.mxu0 %v1817
    %1869 = vmatpush.msra.mxu0 %v1815
    %1870 = vmatpush.msra.mxu0 %v1813
    %1871 = vmatpush.msra.mxu0 %v1811
    %1872 = vmatpush.msra.mxu0 %v1809
    %1873 = vmatpush.msra.mxu0 %v1807
    %1874 = vmatpush.msra.mxu0 %v1805
    %1875 = vmatpush.msra.mxu0 %v1803
    %1876 = vmatpush.msra.mxu0 %v1801
    %1877 = vmatpush.msra.mxu0 %v1799
    %1878 = vmatpush.msra.mxu0 %v1797
    %1879 = vmatpush.msra.mxu0 %v1795
    %1880 = vmatpush.msra.mxu0 %v1793
    %1881 = vmatpush.msra.mxu0 %v1791
    %1882 = vmatpush.msra.mxu0 %v1789
    %1883 = vmatpush.msra.mxu0 %v1787
    %1884 = vmatmul.f32.gmra.mxu0 %v1862
    %v1885 = vpop.f32.mrf.mxu0
    %v1886 = vadd.f32 %v1864, %v1885
    %1887 = vdwg.mxu0
    %1888 = vmatpush.msra.mxu0 %v1818
    %1889 = vmatpush.msra.mxu0 %v1816
    %1890 = vmatpush.msra.mxu0 %v1814
    %1891 = vmatpush.msra.mxu0 %v1812
    %1892 = vmatpush.msra.mxu0 %v1810
    %1893 = vmatpush.msra.mxu0 %v1808
    %1894 = vmatpush.msra.mxu0 %v1806
    %1895 = vmatpush.msra.mxu0 %v1804
    %1896 = vmatpush.msra.mxu0 %v1802
    %1897 = vmatpush.msra.mxu0 %v1800
    %1898 = vmatpush.msra.mxu0 %v1798
    %1899 = vmatpush.msra.mxu0 %v1796
    %1900 = vmatpush.msra.mxu0 %v1794
    %1901 = vmatpush.msra.mxu0 %v1792
    %1902 = vmatpush.msra.mxu0 %v1790
    %1903 = vmatpush.msra.mxu0 %v1788
    %1904 = vmatmul.f32.gmra.mxu0 %v1862
    %v1905 = vpop.f32.mrf.mxu0
    %v1906 = vadd.f32 %v1865, %v1905
    %1907 = vdwg.mxu0
    %v1908 = vld [vmem:[%s3] sm:$0xff]
    %v1909 = vmul.f32 %v1886, %v1908
    %v1910 = vadd.f32 %v1909, %v1906
    %1911 = vst [vmem:[%s4] sm:$0xff] %v1910
    %1912 = vst [vmem:[%s4 + $0x8] sm:$0xff] %v1886
    %1913 = vst [vmem:[%s4 + $0x10] sm:$0xff] %v1906
    // Predicated region
    $region22: #{model_dlow_forward.1} parent=1 // pred_check
      _
    $region23: #{model_dlow_forward.1} parent=1 // pred_check_branch
      %1915 = sbr.rel (0) target = $region25
    $region24: #{model_dlow_forward.1} parent=1 // pred_region
      _
    $region25: #{model_dlow_forward.1} parent=1 // pred_fallthru
      _
    // Predicated region
    $region26: #{model_dlow_forward.1} parent=1 // pred_check
      _
    $region27: #{model_dlow_forward.1} parent=1 // pred_check_branch
      %1917 = sbr.rel (0) target = $region29
    $region28: #{model_dlow_forward.1} parent=1 // pred_region
      _
    $region29: #{model_dlow_forward.1} parent=1 // pred_fallthru
      _
    %1918 = vsyncpa [#allocation6], 1
  %1919 = vsyncmov [#allocation4]
  %s1920 = vpop.sfrf %1919
  %p1921 = scmp.eq.s32.totalorder %s1920, 0
  %p1922 = pneg %p1921
  %1924 = shalt.err (%p1922)

</llo_original>
